<compile_context>
chip_gen: v5e
topology: v5e:2x2
jax: 0.10.0
libtpu: 0.0.40
codegen_flags: <defaults>
</compile_context>

<pallas_src>
import functools

import jax
import jax.numpy as jnp
from jax.experimental import pallas as pl
from jax.experimental.pallas import tpu as pltpu

LANE = 128
CHUNK = 16                       # rows per in-kernel slab (2 f32 vregs / value)
IN_F, H1, H2, OUT_F = 2, 16, 8, 1

# Packed-parameter layout (row-major), 193 f32 values total, held in SMEM.
W1_OFF = 0                       # w1[i, j] -> W1_OFF + i*H1 + j   (2, 16)
B1_OFF = W1_OFF + IN_F * H1      # 32
W2_OFF = B1_OFF + H1             # 48, w2[j, k] -> W2_OFF + j*H2 + k   (16, 8)
B2_OFF = W2_OFF + H1 * H2        # 176
W3_OFF = B2_OFF + H2             # 184, w3[k, 0] -> W3_OFF + k   (8, 1)
B3_OFF = W3_OFF + H2 * OUT_F     # 192
N_PARAMS = B3_OFF + OUT_F        # 193


def mlp_kernel(params_ref, x_ref, o_ref):
    # params_ref: (193,) f32 in SMEM.
    # x_ref block: (2, tile_rows, 128) VMEM; o_ref block: (tile_rows, 128) VMEM.
    tile_rows = x_ref.shape[1]
    n_chunks = tile_rows // CHUNK

    # Hoist every scalar parameter read (and its vreg splat) out of the chunk
    # loop -- re-reading ~193 SMEM scalars per chunk would burn the 2 scalar
    # slots right next to the VALU bottleneck.
    w1 = [[params_ref[W1_OFF + i * H1 + j] for j in range(H1)] for i in range(IN_F)]
    b1 = [params_ref[B1_OFF + j] for j in range(H1)]
    w2 = [[params_ref[W2_OFF + j * H2 + k] for k in range(H2)] for j in range(H1)]
    b2 = [params_ref[B2_OFF + k] for k in range(H2)]
    w3 = [params_ref[W3_OFF + k] for k in range(H2)]
    b3 = params_ref[B3_OFF]

    # Process the tile in CHUNK-row slabs so only ~11 slab-sized values
    # (x0, x1, h1j, 8 layer-2 accumulators) are live at once -> no vreg spills.
    @pl.loop(0, n_chunks)
    def _(c):
        r0 = pl.multiple_of(c * CHUNK, CHUNK)
        rs = pl.ds(r0, CHUNK)
        x0 = x_ref[0, rs, :]                 # (CHUNK, 128), lane-dense
        x1 = x_ref[1, rs, :]

        # Layer-2 accumulators start at their biases (scalar, broadcasts on
        # first add).  Each layer-1 hidden unit is folded straight into them.
        acc2 = list(b2)
        for j in range(H1):
            h1j = jnp.maximum(x0 * w1[0][j] + x1 * w1[1][j] + b1[j], 0.0)
            for k in range(H2):
                acc2[k] = acc2[k] + h1j * w2[j][k]

        # Layer 3: ReLU(h2) . w3 + b3, all on the VPU.
        out = b3
        for k in range(H2):
            out = out + jnp.maximum(acc2[k], 0.0) * w3[k]

        o_ref[rs, :] = out.astype(o_ref.dtype)


def pack_params(params):
    w1, b1, w2, b2, w3, b3 = params
    packed = jnp.concatenate(
        [w1.reshape(-1), b1.reshape(-1),
         w2.reshape(-1), b2.reshape(-1),
         w3.reshape(-1), b3.reshape(-1)]
    ).astype(jnp.float32)
    assert packed.shape == (N_PARAMS,)
    return packed


def _round_up(v, m):
    return ((v + m - 1) // m) * m


def _batch_axis_semantics():
    # On multi-TensorCore chips (v7x: 2 TCs) ask Mosaic to split the batch
    # grid axis across cores explicitly; on single-TC v5e/v6e keep the
    # proven-safe "parallel".
    try:
        kind = jax.devices()[0].device_kind.lower()
        if "7" in kind and hasattr(pltpu, "CORE_PARALLEL"):
            return (pltpu.CORE_PARALLEL,)
    except Exception:
        pass
    return ("parallel",)


@functools.partial(jax.jit, static_argnames=("tile_rows",))
def classical_mlp_forward(x, params, *, tile_rows=512):
    """x: (B, 2) f32. Returns (B, 1) f32, same semantics as the PyTorch MLP."""
    B = x.shape[0]
    packed = pack_params(params)

    # Batch maps to (rows, 128): batch index n <-> (row n // 128, lane n % 128).
    rows_needed = pl.cdiv(B, LANE)
    tr = _round_up(min(tile_rows, _round_up(rows_needed, CHUNK)), CHUNK)
    # If all work would land in one tile but there is enough of it, split into
    # (at least) two tiles so the grid can use both TensorCores on v7x.
    if rows_needed > CHUNK and _round_up(rows_needed, CHUNK) <= tr:
        tr = _round_up(pl.cdiv(rows_needed, 2), CHUNK)
    rows = _round_up(rows_needed, tr)
    b_pad = rows * LANE

    # Pad + transpose to the lane-dense (2, rows, 128) layout.  Under this jit
    # it fuses into a single HBM pass feeding the pallas_call.
    x_pad = jnp.pad(x.astype(jnp.float32), ((0, b_pad - B), (0, 0)))
    x_t = x_pad.T.reshape(IN_F, rows, LANE)

    out = pl.pallas_call(
        mlp_kernel,
        out_shape=jax.ShapeDtypeStruct((rows, LANE), jnp.float32),
        grid_spec=pltpu.PrefetchScalarGridSpec(
            num_scalar_prefetch=0,
            grid=(rows // tr,),
            in_specs=[
                # All 193 params as one tiny SMEM-resident operand.
                pl.BlockSpec(memory_space=pltpu.MemorySpace.SMEM),
                # Lane-dense batch tiles, double-buffered over the grid.
                pl.BlockSpec((IN_F, tr, LANE), lambda i: (0, i, 0)),
            ],
            out_specs=pl.BlockSpec((tr, LANE), lambda i: (i, 0)),
        ),
        compiler_params=pltpu.CompilerParams(
            dimension_semantics=_batch_axis_semantics(),
        ),
    )(packed, x_t)

    return out.reshape(b_pad)[:B].reshape(B, 1)


def init_params(key):
    """Deterministic init matching PyTorch nn.Linear default U(-1/sqrt(fan_in), +)."""
    def linear(k, fan_in, fan_out):
        kw, kb = jax.random.split(k)
        bound = 1.0 / jnp.sqrt(fan_in)
        w = jax.random.uniform(kw, (fan_in, fan_out), jnp.float32, -bound, bound)
        b = jax.random.uniform(kb, (fan_out,), jnp.float32, -bound, bound)
        return w, b

    k1, k2, k3 = jax.random.split(key, 3)
    w1, b1 = linear(k1, IN_F, H1)
    w2, b2 = linear(k2, H1, H2)
    w3, b3 = linear(k3, H2, OUT_F)
    return (w1, b1, w2, b2, w3, b3)


def reference_forward(x, params):
    w1, b1, w2, b2, w3, b3 = params
    dot = lambda a, b: jnp.dot(a, b, precision=jax.lax.Precision.HIGHEST)
    h = jnp.maximum(dot(x, w1) + b1, 0.0)
    h = jnp.maximum(dot(h, w2) + b2, 0.0)
    return dot(h, w3) + b3


if __name__ == "__main__":
    key = jax.random.PRNGKey(0)
    kx, kx2, kp = jax.random.split(key, 3)
    params = init_params(kp)

    # Small-batch check (matches the PyTorch module's (B, 2) input).
    batch = 8
    x = jax.random.normal(kx, (batch, 2), jnp.float32)
    out = jax.block_until_ready(classical_mlp_forward(x, params))
    ref = reference_forward(x, params)
    assert out.shape == (batch, 1), out.shape
    assert jnp.allclose(out, ref, atol=1e-5, rtol=1e-5), "mismatch vs reference (B=8)"

    # Larger ragged batch to exercise padding + the multi-step parallel grid.
    batch2 = 4229
    x2 = jax.random.normal(kx2, (batch2, 2), jnp.float32)
    out2 = jax.block_until_ready(classical_mlp_forward(x2, params))
    ref2 = reference_forward(x2, params)
    assert out2.shape == (batch2, 1), out2.shape
    assert jnp.allclose(out2, ref2, atol=1e-5, rtol=1e-5), "mismatch vs reference (B=4229)"

    print("KERNEL_OK")
</pallas_src>

<mosaic_0001>
module attributes {stable_mosaic.version = 11 : i64} {
  func.func @mlp_kernel(%arg0: i32, %arg1: memref<193xf32, #tpu.memory_space<smem>>, %arg2: memref<2x16x128xf32, #tpu.memory_space<vmem>>, %arg3: memref<16x128xf32, #tpu.memory_space<vmem>>) attributes {dimension_semantics = [#tpu.dimension_semantics<parallel>], iteration_bounds = array<i64: 1>, scalar_prefetch = 0 : i64, scratch_operands = 0 : i64, tpu.core_type = #tpu.core_type<tc>, window_params = [{transform_indices = @transform_0, window_bounds = array<i64: 193>}, {transform_indices = @transform_1, window_bounds = array<i64: 2, 16, 128>}, {transform_indices = @transform_2, window_bounds = array<i64: 16, 128>}]} {
    %c0 = arith.constant 0 : index
    %0 = memref.load %arg1[%c0] : memref<193xf32, #tpu.memory_space<smem>>
    %c1 = arith.constant 1 : index
    %1 = memref.load %arg1[%c1] : memref<193xf32, #tpu.memory_space<smem>>
    %c2 = arith.constant 2 : index
    %2 = memref.load %arg1[%c2] : memref<193xf32, #tpu.memory_space<smem>>
    %c3 = arith.constant 3 : index
    %3 = memref.load %arg1[%c3] : memref<193xf32, #tpu.memory_space<smem>>
    %c4 = arith.constant 4 : index
    %4 = memref.load %arg1[%c4] : memref<193xf32, #tpu.memory_space<smem>>
    %c5 = arith.constant 5 : index
    %5 = memref.load %arg1[%c5] : memref<193xf32, #tpu.memory_space<smem>>
    %c6 = arith.constant 6 : index
    %6 = memref.load %arg1[%c6] : memref<193xf32, #tpu.memory_space<smem>>
    %c7 = arith.constant 7 : index
    %7 = memref.load %arg1[%c7] : memref<193xf32, #tpu.memory_space<smem>>
    %c8 = arith.constant 8 : index
    %8 = memref.load %arg1[%c8] : memref<193xf32, #tpu.memory_space<smem>>
    %c9 = arith.constant 9 : index
    %9 = memref.load %arg1[%c9] : memref<193xf32, #tpu.memory_space<smem>>
    %c10 = arith.constant 10 : index
    %10 = memref.load %arg1[%c10] : memref<193xf32, #tpu.memory_space<smem>>
    %c11 = arith.constant 11 : index
    %11 = memref.load %arg1[%c11] : memref<193xf32, #tpu.memory_space<smem>>
    %c12 = arith.constant 12 : index
    %12 = memref.load %arg1[%c12] : memref<193xf32, #tpu.memory_space<smem>>
    %c13 = arith.constant 13 : index
    %13 = memref.load %arg1[%c13] : memref<193xf32, #tpu.memory_space<smem>>
    %c14 = arith.constant 14 : index
    %14 = memref.load %arg1[%c14] : memref<193xf32, #tpu.memory_space<smem>>
    %c15 = arith.constant 15 : index
    %15 = memref.load %arg1[%c15] : memref<193xf32, #tpu.memory_space<smem>>
    %c16 = arith.constant 16 : index
    %16 = memref.load %arg1[%c16] : memref<193xf32, #tpu.memory_space<smem>>
    %c17 = arith.constant 17 : index
    %17 = memref.load %arg1[%c17] : memref<193xf32, #tpu.memory_space<smem>>
    %c18 = arith.constant 18 : index
    %18 = memref.load %arg1[%c18] : memref<193xf32, #tpu.memory_space<smem>>
    %c19 = arith.constant 19 : index
    %19 = memref.load %arg1[%c19] : memref<193xf32, #tpu.memory_space<smem>>
    %c20 = arith.constant 20 : index
    %20 = memref.load %arg1[%c20] : memref<193xf32, #tpu.memory_space<smem>>
    %c21 = arith.constant 21 : index
    %21 = memref.load %arg1[%c21] : memref<193xf32, #tpu.memory_space<smem>>
    %c22 = arith.constant 22 : index
    %22 = memref.load %arg1[%c22] : memref<193xf32, #tpu.memory_space<smem>>
    %c23 = arith.constant 23 : index
    %23 = memref.load %arg1[%c23] : memref<193xf32, #tpu.memory_space<smem>>
    %c24 = arith.constant 24 : index
    %24 = memref.load %arg1[%c24] : memref<193xf32, #tpu.memory_space<smem>>
    %c25 = arith.constant 25 : index
    %25 = memref.load %arg1[%c25] : memref<193xf32, #tpu.memory_space<smem>>
    %c26 = arith.constant 26 : index
    %26 = memref.load %arg1[%c26] : memref<193xf32, #tpu.memory_space<smem>>
    %c27 = arith.constant 27 : index
    %27 = memref.load %arg1[%c27] : memref<193xf32, #tpu.memory_space<smem>>
    %c28 = arith.constant 28 : index
    %28 = memref.load %arg1[%c28] : memref<193xf32, #tpu.memory_space<smem>>
    %c29 = arith.constant 29 : index
    %29 = memref.load %arg1[%c29] : memref<193xf32, #tpu.memory_space<smem>>
    %c30 = arith.constant 30 : index
    %30 = memref.load %arg1[%c30] : memref<193xf32, #tpu.memory_space<smem>>
    %c31 = arith.constant 31 : index
    %31 = memref.load %arg1[%c31] : memref<193xf32, #tpu.memory_space<smem>>
    %c32 = arith.constant 32 : index
    %32 = memref.load %arg1[%c32] : memref<193xf32, #tpu.memory_space<smem>>
    %c33 = arith.constant 33 : index
    %33 = memref.load %arg1[%c33] : memref<193xf32, #tpu.memory_space<smem>>
    %c34 = arith.constant 34 : index
    %34 = memref.load %arg1[%c34] : memref<193xf32, #tpu.memory_space<smem>>
    %c35 = arith.constant 35 : index
    %35 = memref.load %arg1[%c35] : memref<193xf32, #tpu.memory_space<smem>>
    %c36 = arith.constant 36 : index
    %36 = memref.load %arg1[%c36] : memref<193xf32, #tpu.memory_space<smem>>
    %c37 = arith.constant 37 : index
    %37 = memref.load %arg1[%c37] : memref<193xf32, #tpu.memory_space<smem>>
    %c38 = arith.constant 38 : index
    %38 = memref.load %arg1[%c38] : memref<193xf32, #tpu.memory_space<smem>>
    %c39 = arith.constant 39 : index
    %39 = memref.load %arg1[%c39] : memref<193xf32, #tpu.memory_space<smem>>
    %c40 = arith.constant 40 : index
    %40 = memref.load %arg1[%c40] : memref<193xf32, #tpu.memory_space<smem>>
    %c41 = arith.constant 41 : index
    %41 = memref.load %arg1[%c41] : memref<193xf32, #tpu.memory_space<smem>>
    %c42 = arith.constant 42 : index
    %42 = memref.load %arg1[%c42] : memref<193xf32, #tpu.memory_space<smem>>
    %c43 = arith.constant 43 : index
    %43 = memref.load %arg1[%c43] : memref<193xf32, #tpu.memory_space<smem>>
    %c44 = arith.constant 44 : index
    %44 = memref.load %arg1[%c44] : memref<193xf32, #tpu.memory_space<smem>>
    %c45 = arith.constant 45 : index
    %45 = memref.load %arg1[%c45] : memref<193xf32, #tpu.memory_space<smem>>
    %c46 = arith.constant 46 : index
    %46 = memref.load %arg1[%c46] : memref<193xf32, #tpu.memory_space<smem>>
    %c47 = arith.constant 47 : index
    %47 = memref.load %arg1[%c47] : memref<193xf32, #tpu.memory_space<smem>>
    %c48 = arith.constant 48 : index
    %48 = memref.load %arg1[%c48] : memref<193xf32, #tpu.memory_space<smem>>
    %c49 = arith.constant 49 : index
    %49 = memref.load %arg1[%c49] : memref<193xf32, #tpu.memory_space<smem>>
    %c50 = arith.constant 50 : index
    %50 = memref.load %arg1[%c50] : memref<193xf32, #tpu.memory_space<smem>>
    %c51 = arith.constant 51 : index
    %51 = memref.load %arg1[%c51] : memref<193xf32, #tpu.memory_space<smem>>
    %c52 = arith.constant 52 : index
    %52 = memref.load %arg1[%c52] : memref<193xf32, #tpu.memory_space<smem>>
    %c53 = arith.constant 53 : index
    %53 = memref.load %arg1[%c53] : memref<193xf32, #tpu.memory_space<smem>>
    %c54 = arith.constant 54 : index
    %54 = memref.load %arg1[%c54] : memref<193xf32, #tpu.memory_space<smem>>
    %c55 = arith.constant 55 : index
    %55 = memref.load %arg1[%c55] : memref<193xf32, #tpu.memory_space<smem>>
    %c56 = arith.constant 56 : index
    %56 = memref.load %arg1[%c56] : memref<193xf32, #tpu.memory_space<smem>>
    %c57 = arith.constant 57 : index
    %57 = memref.load %arg1[%c57] : memref<193xf32, #tpu.memory_space<smem>>
    %c58 = arith.constant 58 : index
    %58 = memref.load %arg1[%c58] : memref<193xf32, #tpu.memory_space<smem>>
    %c59 = arith.constant 59 : index
    %59 = memref.load %arg1[%c59] : memref<193xf32, #tpu.memory_space<smem>>
    %c60 = arith.constant 60 : index
    %60 = memref.load %arg1[%c60] : memref<193xf32, #tpu.memory_space<smem>>
    %c61 = arith.constant 61 : index
    %61 = memref.load %arg1[%c61] : memref<193xf32, #tpu.memory_space<smem>>
    %c62 = arith.constant 62 : index
    %62 = memref.load %arg1[%c62] : memref<193xf32, #tpu.memory_space<smem>>
    %c63 = arith.constant 63 : index
    %63 = memref.load %arg1[%c63] : memref<193xf32, #tpu.memory_space<smem>>
    %c64 = arith.constant 64 : index
    %64 = memref.load %arg1[%c64] : memref<193xf32, #tpu.memory_space<smem>>
    %c65 = arith.constant 65 : index
    %65 = memref.load %arg1[%c65] : memref<193xf32, #tpu.memory_space<smem>>
    %c66 = arith.constant 66 : index
    %66 = memref.load %arg1[%c66] : memref<193xf32, #tpu.memory_space<smem>>
    %c67 = arith.constant 67 : index
    %67 = memref.load %arg1[%c67] : memref<193xf32, #tpu.memory_space<smem>>
    %c68 = arith.constant 68 : index
    %68 = memref.load %arg1[%c68] : memref<193xf32, #tpu.memory_space<smem>>
    %c69 = arith.constant 69 : index
    %69 = memref.load %arg1[%c69] : memref<193xf32, #tpu.memory_space<smem>>
    %c70 = arith.constant 70 : index
    %70 = memref.load %arg1[%c70] : memref<193xf32, #tpu.memory_space<smem>>
    %c71 = arith.constant 71 : index
    %71 = memref.load %arg1[%c71] : memref<193xf32, #tpu.memory_space<smem>>
    %c72 = arith.constant 72 : index
    %72 = memref.load %arg1[%c72] : memref<193xf32, #tpu.memory_space<smem>>
    %c73 = arith.constant 73 : index
    %73 = memref.load %arg1[%c73] : memref<193xf32, #tpu.memory_space<smem>>
    %c74 = arith.constant 74 : index
    %74 = memref.load %arg1[%c74] : memref<193xf32, #tpu.memory_space<smem>>
    %c75 = arith.constant 75 : index
    %75 = memref.load %arg1[%c75] : memref<193xf32, #tpu.memory_space<smem>>
    %c76 = arith.constant 76 : index
    %76 = memref.load %arg1[%c76] : memref<193xf32, #tpu.memory_space<smem>>
    %c77 = arith.constant 77 : index
    %77 = memref.load %arg1[%c77] : memref<193xf32, #tpu.memory_space<smem>>
    %c78 = arith.constant 78 : index
    %78 = memref.load %arg1[%c78] : memref<193xf32, #tpu.memory_space<smem>>
    %c79 = arith.constant 79 : index
    %79 = memref.load %arg1[%c79] : memref<193xf32, #tpu.memory_space<smem>>
    %c80 = arith.constant 80 : index
    %80 = memref.load %arg1[%c80] : memref<193xf32, #tpu.memory_space<smem>>
    %c81 = arith.constant 81 : index
    %81 = memref.load %arg1[%c81] : memref<193xf32, #tpu.memory_space<smem>>
    %c82 = arith.constant 82 : index
    %82 = memref.load %arg1[%c82] : memref<193xf32, #tpu.memory_space<smem>>
    %c83 = arith.constant 83 : index
    %83 = memref.load %arg1[%c83] : memref<193xf32, #tpu.memory_space<smem>>
    %c84 = arith.constant 84 : index
    %84 = memref.load %arg1[%c84] : memref<193xf32, #tpu.memory_space<smem>>
    %c85 = arith.constant 85 : index
    %85 = memref.load %arg1[%c85] : memref<193xf32, #tpu.memory_space<smem>>
    %c86 = arith.constant 86 : index
    %86 = memref.load %arg1[%c86] : memref<193xf32, #tpu.memory_space<smem>>
    %c87 = arith.constant 87 : index
    %87 = memref.load %arg1[%c87] : memref<193xf32, #tpu.memory_space<smem>>
    %c88 = arith.constant 88 : index
    %88 = memref.load %arg1[%c88] : memref<193xf32, #tpu.memory_space<smem>>
    %c89 = arith.constant 89 : index
    %89 = memref.load %arg1[%c89] : memref<193xf32, #tpu.memory_space<smem>>
    %c90 = arith.constant 90 : index
    %90 = memref.load %arg1[%c90] : memref<193xf32, #tpu.memory_space<smem>>
    %c91 = arith.constant 91 : index
    %91 = memref.load %arg1[%c91] : memref<193xf32, #tpu.memory_space<smem>>
    %c92 = arith.constant 92 : index
    %92 = memref.load %arg1[%c92] : memref<193xf32, #tpu.memory_space<smem>>
    %c93 = arith.constant 93 : index
    %93 = memref.load %arg1[%c93] : memref<193xf32, #tpu.memory_space<smem>>
    %c94 = arith.constant 94 : index
    %94 = memref.load %arg1[%c94] : memref<193xf32, #tpu.memory_space<smem>>
    %c95 = arith.constant 95 : index
    %95 = memref.load %arg1[%c95] : memref<193xf32, #tpu.memory_space<smem>>
    %c96 = arith.constant 96 : index
    %96 = memref.load %arg1[%c96] : memref<193xf32, #tpu.memory_space<smem>>
    %c97 = arith.constant 97 : index
    %97 = memref.load %arg1[%c97] : memref<193xf32, #tpu.memory_space<smem>>
    %c98 = arith.constant 98 : index
    %98 = memref.load %arg1[%c98] : memref<193xf32, #tpu.memory_space<smem>>
    %c99 = arith.constant 99 : index
    %99 = memref.load %arg1[%c99] : memref<193xf32, #tpu.memory_space<smem>>
    %c100 = arith.constant 100 : index
    %100 = memref.load %arg1[%c100] : memref<193xf32, #tpu.memory_space<smem>>
    %c101 = arith.constant 101 : index
    %101 = memref.load %arg1[%c101] : memref<193xf32, #tpu.memory_space<smem>>
    %c102 = arith.constant 102 : index
    %102 = memref.load %arg1[%c102] : memref<193xf32, #tpu.memory_space<smem>>
    %c103 = arith.constant 103 : index
    %103 = memref.load %arg1[%c103] : memref<193xf32, #tpu.memory_space<smem>>
    %c104 = arith.constant 104 : index
    %104 = memref.load %arg1[%c104] : memref<193xf32, #tpu.memory_space<smem>>
    %c105 = arith.constant 105 : index
    %105 = memref.load %arg1[%c105] : memref<193xf32, #tpu.memory_space<smem>>
    %c106 = arith.constant 106 : index
    %106 = memref.load %arg1[%c106] : memref<193xf32, #tpu.memory_space<smem>>
    %c107 = arith.constant 107 : index
    %107 = memref.load %arg1[%c107] : memref<193xf32, #tpu.memory_space<smem>>
    %c108 = arith.constant 108 : index
    %108 = memref.load %arg1[%c108] : memref<193xf32, #tpu.memory_space<smem>>
    %c109 = arith.constant 109 : index
    %109 = memref.load %arg1[%c109] : memref<193xf32, #tpu.memory_space<smem>>
    %c110 = arith.constant 110 : index
    %110 = memref.load %arg1[%c110] : memref<193xf32, #tpu.memory_space<smem>>
    %c111 = arith.constant 111 : index
    %111 = memref.load %arg1[%c111] : memref<193xf32, #tpu.memory_space<smem>>
    %c112 = arith.constant 112 : index
    %112 = memref.load %arg1[%c112] : memref<193xf32, #tpu.memory_space<smem>>
    %c113 = arith.constant 113 : index
    %113 = memref.load %arg1[%c113] : memref<193xf32, #tpu.memory_space<smem>>
    %c114 = arith.constant 114 : index
    %114 = memref.load %arg1[%c114] : memref<193xf32, #tpu.memory_space<smem>>
    %c115 = arith.constant 115 : index
    %115 = memref.load %arg1[%c115] : memref<193xf32, #tpu.memory_space<smem>>
    %c116 = arith.constant 116 : index
    %116 = memref.load %arg1[%c116] : memref<193xf32, #tpu.memory_space<smem>>
    %c117 = arith.constant 117 : index
    %117 = memref.load %arg1[%c117] : memref<193xf32, #tpu.memory_space<smem>>
    %c118 = arith.constant 118 : index
    %118 = memref.load %arg1[%c118] : memref<193xf32, #tpu.memory_space<smem>>
    %c119 = arith.constant 119 : index
    %119 = memref.load %arg1[%c119] : memref<193xf32, #tpu.memory_space<smem>>
    %c120 = arith.constant 120 : index
    %120 = memref.load %arg1[%c120] : memref<193xf32, #tpu.memory_space<smem>>
    %c121 = arith.constant 121 : index
    %121 = memref.load %arg1[%c121] : memref<193xf32, #tpu.memory_space<smem>>
    %c122 = arith.constant 122 : index
    %122 = memref.load %arg1[%c122] : memref<193xf32, #tpu.memory_space<smem>>
    %c123 = arith.constant 123 : index
    %123 = memref.load %arg1[%c123] : memref<193xf32, #tpu.memory_space<smem>>
    %c124 = arith.constant 124 : index
    %124 = memref.load %arg1[%c124] : memref<193xf32, #tpu.memory_space<smem>>
    %c125 = arith.constant 125 : index
    %125 = memref.load %arg1[%c125] : memref<193xf32, #tpu.memory_space<smem>>
    %c126 = arith.constant 126 : index
    %126 = memref.load %arg1[%c126] : memref<193xf32, #tpu.memory_space<smem>>
    %c127 = arith.constant 127 : index
    %127 = memref.load %arg1[%c127] : memref<193xf32, #tpu.memory_space<smem>>
    %c128 = arith.constant 128 : index
    %128 = memref.load %arg1[%c128] : memref<193xf32, #tpu.memory_space<smem>>
    %c129 = arith.constant 129 : index
    %129 = memref.load %arg1[%c129] : memref<193xf32, #tpu.memory_space<smem>>
    %c130 = arith.constant 130 : index
    %130 = memref.load %arg1[%c130] : memref<193xf32, #tpu.memory_space<smem>>
    %c131 = arith.constant 131 : index
    %131 = memref.load %arg1[%c131] : memref<193xf32, #tpu.memory_space<smem>>
    %c132 = arith.constant 132 : index
    %132 = memref.load %arg1[%c132] : memref<193xf32, #tpu.memory_space<smem>>
    %c133 = arith.constant 133 : index
    %133 = memref.load %arg1[%c133] : memref<193xf32, #tpu.memory_space<smem>>
    %c134 = arith.constant 134 : index
    %134 = memref.load %arg1[%c134] : memref<193xf32, #tpu.memory_space<smem>>
    %c135 = arith.constant 135 : index
    %135 = memref.load %arg1[%c135] : memref<193xf32, #tpu.memory_space<smem>>
    %c136 = arith.constant 136 : index
    %136 = memref.load %arg1[%c136] : memref<193xf32, #tpu.memory_space<smem>>
    %c137 = arith.constant 137 : index
    %137 = memref.load %arg1[%c137] : memref<193xf32, #tpu.memory_space<smem>>
    %c138 = arith.constant 138 : index
    %138 = memref.load %arg1[%c138] : memref<193xf32, #tpu.memory_space<smem>>
    %c139 = arith.constant 139 : index
    %139 = memref.load %arg1[%c139] : memref<193xf32, #tpu.memory_space<smem>>
    %c140 = arith.constant 140 : index
    %140 = memref.load %arg1[%c140] : memref<193xf32, #tpu.memory_space<smem>>
    %c141 = arith.constant 141 : index
    %141 = memref.load %arg1[%c141] : memref<193xf32, #tpu.memory_space<smem>>
    %c142 = arith.constant 142 : index
    %142 = memref.load %arg1[%c142] : memref<193xf32, #tpu.memory_space<smem>>
    %c143 = arith.constant 143 : index
    %143 = memref.load %arg1[%c143] : memref<193xf32, #tpu.memory_space<smem>>
    %c144 = arith.constant 144 : index
    %144 = memref.load %arg1[%c144] : memref<193xf32, #tpu.memory_space<smem>>
    %c145 = arith.constant 145 : index
    %145 = memref.load %arg1[%c145] : memref<193xf32, #tpu.memory_space<smem>>
    %c146 = arith.constant 146 : index
    %146 = memref.load %arg1[%c146] : memref<193xf32, #tpu.memory_space<smem>>
    %c147 = arith.constant 147 : index
    %147 = memref.load %arg1[%c147] : memref<193xf32, #tpu.memory_space<smem>>
    %c148 = arith.constant 148 : index
    %148 = memref.load %arg1[%c148] : memref<193xf32, #tpu.memory_space<smem>>
    %c149 = arith.constant 149 : index
    %149 = memref.load %arg1[%c149] : memref<193xf32, #tpu.memory_space<smem>>
    %c150 = arith.constant 150 : index
    %150 = memref.load %arg1[%c150] : memref<193xf32, #tpu.memory_space<smem>>
    %c151 = arith.constant 151 : index
    %151 = memref.load %arg1[%c151] : memref<193xf32, #tpu.memory_space<smem>>
    %c152 = arith.constant 152 : index
    %152 = memref.load %arg1[%c152] : memref<193xf32, #tpu.memory_space<smem>>
    %c153 = arith.constant 153 : index
    %153 = memref.load %arg1[%c153] : memref<193xf32, #tpu.memory_space<smem>>
    %c154 = arith.constant 154 : index
    %154 = memref.load %arg1[%c154] : memref<193xf32, #tpu.memory_space<smem>>
    %c155 = arith.constant 155 : index
    %155 = memref.load %arg1[%c155] : memref<193xf32, #tpu.memory_space<smem>>
    %c156 = arith.constant 156 : index
    %156 = memref.load %arg1[%c156] : memref<193xf32, #tpu.memory_space<smem>>
    %c157 = arith.constant 157 : index
    %157 = memref.load %arg1[%c157] : memref<193xf32, #tpu.memory_space<smem>>
    %c158 = arith.constant 158 : index
    %158 = memref.load %arg1[%c158] : memref<193xf32, #tpu.memory_space<smem>>
    %c159 = arith.constant 159 : index
    %159 = memref.load %arg1[%c159] : memref<193xf32, #tpu.memory_space<smem>>
    %c160 = arith.constant 160 : index
    %160 = memref.load %arg1[%c160] : memref<193xf32, #tpu.memory_space<smem>>
    %c161 = arith.constant 161 : index
    %161 = memref.load %arg1[%c161] : memref<193xf32, #tpu.memory_space<smem>>
    %c162 = arith.constant 162 : index
    %162 = memref.load %arg1[%c162] : memref<193xf32, #tpu.memory_space<smem>>
    %c163 = arith.constant 163 : index
    %163 = memref.load %arg1[%c163] : memref<193xf32, #tpu.memory_space<smem>>
    %c164 = arith.constant 164 : index
    %164 = memref.load %arg1[%c164] : memref<193xf32, #tpu.memory_space<smem>>
    %c165 = arith.constant 165 : index
    %165 = memref.load %arg1[%c165] : memref<193xf32, #tpu.memory_space<smem>>
    %c166 = arith.constant 166 : index
    %166 = memref.load %arg1[%c166] : memref<193xf32, #tpu.memory_space<smem>>
    %c167 = arith.constant 167 : index
    %167 = memref.load %arg1[%c167] : memref<193xf32, #tpu.memory_space<smem>>
    %c168 = arith.constant 168 : index
    %168 = memref.load %arg1[%c168] : memref<193xf32, #tpu.memory_space<smem>>
    %c169 = arith.constant 169 : index
    %169 = memref.load %arg1[%c169] : memref<193xf32, #tpu.memory_space<smem>>
    %c170 = arith.constant 170 : index
    %170 = memref.load %arg1[%c170] : memref<193xf32, #tpu.memory_space<smem>>
    %c171 = arith.constant 171 : index
    %171 = memref.load %arg1[%c171] : memref<193xf32, #tpu.memory_space<smem>>
    %c172 = arith.constant 172 : index
    %172 = memref.load %arg1[%c172] : memref<193xf32, #tpu.memory_space<smem>>
    %c173 = arith.constant 173 : index
    %173 = memref.load %arg1[%c173] : memref<193xf32, #tpu.memory_space<smem>>
    %c174 = arith.constant 174 : index
    %174 = memref.load %arg1[%c174] : memref<193xf32, #tpu.memory_space<smem>>
    %c175 = arith.constant 175 : index
    %175 = memref.load %arg1[%c175] : memref<193xf32, #tpu.memory_space<smem>>
    %c176 = arith.constant 176 : index
    %176 = memref.load %arg1[%c176] : memref<193xf32, #tpu.memory_space<smem>>
    %c177 = arith.constant 177 : index
    %177 = memref.load %arg1[%c177] : memref<193xf32, #tpu.memory_space<smem>>
    %c178 = arith.constant 178 : index
    %178 = memref.load %arg1[%c178] : memref<193xf32, #tpu.memory_space<smem>>
    %c179 = arith.constant 179 : index
    %179 = memref.load %arg1[%c179] : memref<193xf32, #tpu.memory_space<smem>>
    %c180 = arith.constant 180 : index
    %180 = memref.load %arg1[%c180] : memref<193xf32, #tpu.memory_space<smem>>
    %c181 = arith.constant 181 : index
    %181 = memref.load %arg1[%c181] : memref<193xf32, #tpu.memory_space<smem>>
    %c182 = arith.constant 182 : index
    %182 = memref.load %arg1[%c182] : memref<193xf32, #tpu.memory_space<smem>>
    %c183 = arith.constant 183 : index
    %183 = memref.load %arg1[%c183] : memref<193xf32, #tpu.memory_space<smem>>
    %c184 = arith.constant 184 : index
    %184 = memref.load %arg1[%c184] : memref<193xf32, #tpu.memory_space<smem>>
    %c185 = arith.constant 185 : index
    %185 = memref.load %arg1[%c185] : memref<193xf32, #tpu.memory_space<smem>>
    %c186 = arith.constant 186 : index
    %186 = memref.load %arg1[%c186] : memref<193xf32, #tpu.memory_space<smem>>
    %c187 = arith.constant 187 : index
    %187 = memref.load %arg1[%c187] : memref<193xf32, #tpu.memory_space<smem>>
    %c188 = arith.constant 188 : index
    %188 = memref.load %arg1[%c188] : memref<193xf32, #tpu.memory_space<smem>>
    %c189 = arith.constant 189 : index
    %189 = memref.load %arg1[%c189] : memref<193xf32, #tpu.memory_space<smem>>
    %c190 = arith.constant 190 : index
    %190 = memref.load %arg1[%c190] : memref<193xf32, #tpu.memory_space<smem>>
    %c191 = arith.constant 191 : index
    %191 = memref.load %arg1[%c191] : memref<193xf32, #tpu.memory_space<smem>>
    %c192 = arith.constant 192 : index
    %192 = memref.load %arg1[%c192] : memref<193xf32, #tpu.memory_space<smem>>
    %c0_i32 = arith.constant 0 : i32
    %c1_i32 = arith.constant 1 : i32
    %193 = arith.muli %c0_i32, %c1_i32 : i32
    %c0_i32_0 = arith.constant 0 : i32
    %194 = arith.addi %c0_i32_0, %193 : i32
    %c16_i32 = arith.constant 16 : i32
    %195 = arith.muli %194, %c16_i32 : i32
    %196 = tpu.assume_multiple %195, 16 : i32
    %c0_1 = arith.constant 0 : index
    %197 = arith.index_cast %196 : i32 to index
    %c0_2 = arith.constant 0 : index
    %198 = vector.load %arg2[%c0_1, %197, %c0_2] : memref<2x16x128xf32, #tpu.memory_space<vmem>>, vector<1x16x128xf32>
    %199 = vector.shape_cast %198 : vector<1x16x128xf32> to vector<16x128xf32>
    %c1_3 = arith.constant 1 : index
    %200 = arith.index_cast %196 : i32 to index
    %c0_4 = arith.constant 0 : index
    %201 = vector.load %arg2[%c1_3, %200, %c0_4] : memref<2x16x128xf32, #tpu.memory_space<vmem>>, vector<1x16x128xf32>
    %202 = vector.shape_cast %201 : vector<1x16x128xf32> to vector<16x128xf32>
    %203 = vector.broadcast %0 : f32 to vector<16x128xf32>
    %204 = arith.mulf %199, %203 : vector<16x128xf32>
    %205 = vector.broadcast %16 : f32 to vector<16x128xf32>
    %206 = arith.mulf %202, %205 : vector<16x128xf32>
    %207 = arith.addf %204, %206 : vector<16x128xf32>
    %208 = vector.broadcast %32 : f32 to vector<16x128xf32>
    %209 = arith.addf %207, %208 : vector<16x128xf32>
    %cst = arith.constant 0.000000e+00 : f32
    %210 = vector.broadcast %cst : f32 to vector<16x128xf32>
    %211 = arith.maximumf %209, %210 : vector<16x128xf32>
    %212 = vector.broadcast %48 : f32 to vector<16x128xf32>
    %213 = arith.mulf %211, %212 : vector<16x128xf32>
    %214 = vector.broadcast %176 : f32 to vector<16x128xf32>
    %215 = arith.addf %214, %213 : vector<16x128xf32>
    %216 = vector.broadcast %49 : f32 to vector<16x128xf32>
    %217 = arith.mulf %211, %216 : vector<16x128xf32>
    %218 = vector.broadcast %177 : f32 to vector<16x128xf32>
    %219 = arith.addf %218, %217 : vector<16x128xf32>
    %220 = vector.broadcast %50 : f32 to vector<16x128xf32>
    %221 = arith.mulf %211, %220 : vector<16x128xf32>
    %222 = vector.broadcast %178 : f32 to vector<16x128xf32>
    %223 = arith.addf %222, %221 : vector<16x128xf32>
    %224 = vector.broadcast %51 : f32 to vector<16x128xf32>
    %225 = arith.mulf %211, %224 : vector<16x128xf32>
    %226 = vector.broadcast %179 : f32 to vector<16x128xf32>
    %227 = arith.addf %226, %225 : vector<16x128xf32>
    %228 = vector.broadcast %52 : f32 to vector<16x128xf32>
    %229 = arith.mulf %211, %228 : vector<16x128xf32>
    %230 = vector.broadcast %180 : f32 to vector<16x128xf32>
    %231 = arith.addf %230, %229 : vector<16x128xf32>
    %232 = vector.broadcast %53 : f32 to vector<16x128xf32>
    %233 = arith.mulf %211, %232 : vector<16x128xf32>
    %234 = vector.broadcast %181 : f32 to vector<16x128xf32>
    %235 = arith.addf %234, %233 : vector<16x128xf32>
    %236 = vector.broadcast %54 : f32 to vector<16x128xf32>
    %237 = arith.mulf %211, %236 : vector<16x128xf32>
    %238 = vector.broadcast %182 : f32 to vector<16x128xf32>
    %239 = arith.addf %238, %237 : vector<16x128xf32>
    %240 = vector.broadcast %55 : f32 to vector<16x128xf32>
    %241 = arith.mulf %211, %240 : vector<16x128xf32>
    %242 = vector.broadcast %183 : f32 to vector<16x128xf32>
    %243 = arith.addf %242, %241 : vector<16x128xf32>
    %244 = vector.broadcast %1 : f32 to vector<16x128xf32>
    %245 = arith.mulf %199, %244 : vector<16x128xf32>
    %246 = vector.broadcast %17 : f32 to vector<16x128xf32>
    %247 = arith.mulf %202, %246 : vector<16x128xf32>
    %248 = arith.addf %245, %247 : vector<16x128xf32>
    %249 = vector.broadcast %33 : f32 to vector<16x128xf32>
    %250 = arith.addf %248, %249 : vector<16x128xf32>
    %cst_5 = arith.constant 0.000000e+00 : f32
    %251 = vector.broadcast %cst_5 : f32 to vector<16x128xf32>
    %252 = arith.maximumf %250, %251 : vector<16x128xf32>
    %253 = vector.broadcast %56 : f32 to vector<16x128xf32>
    %254 = arith.mulf %252, %253 : vector<16x128xf32>
    %255 = arith.addf %215, %254 : vector<16x128xf32>
    %256 = vector.broadcast %57 : f32 to vector<16x128xf32>
    %257 = arith.mulf %252, %256 : vector<16x128xf32>
    %258 = arith.addf %219, %257 : vector<16x128xf32>
    %259 = vector.broadcast %58 : f32 to vector<16x128xf32>
    %260 = arith.mulf %252, %259 : vector<16x128xf32>
    %261 = arith.addf %223, %260 : vector<16x128xf32>
    %262 = vector.broadcast %59 : f32 to vector<16x128xf32>
    %263 = arith.mulf %252, %262 : vector<16x128xf32>
    %264 = arith.addf %227, %263 : vector<16x128xf32>
    %265 = vector.broadcast %60 : f32 to vector<16x128xf32>
    %266 = arith.mulf %252, %265 : vector<16x128xf32>
    %267 = arith.addf %231, %266 : vector<16x128xf32>
    %268 = vector.broadcast %61 : f32 to vector<16x128xf32>
    %269 = arith.mulf %252, %268 : vector<16x128xf32>
    %270 = arith.addf %235, %269 : vector<16x128xf32>
    %271 = vector.broadcast %62 : f32 to vector<16x128xf32>
    %272 = arith.mulf %252, %271 : vector<16x128xf32>
    %273 = arith.addf %239, %272 : vector<16x128xf32>
    %274 = vector.broadcast %63 : f32 to vector<16x128xf32>
    %275 = arith.mulf %252, %274 : vector<16x128xf32>
    %276 = arith.addf %243, %275 : vector<16x128xf32>
    %277 = vector.broadcast %2 : f32 to vector<16x128xf32>
    %278 = arith.mulf %199, %277 : vector<16x128xf32>
    %279 = vector.broadcast %18 : f32 to vector<16x128xf32>
    %280 = arith.mulf %202, %279 : vector<16x128xf32>
    %281 = arith.addf %278, %280 : vector<16x128xf32>
    %282 = vector.broadcast %34 : f32 to vector<16x128xf32>
    %283 = arith.addf %281, %282 : vector<16x128xf32>
    %cst_6 = arith.constant 0.000000e+00 : f32
    %284 = vector.broadcast %cst_6 : f32 to vector<16x128xf32>
    %285 = arith.maximumf %283, %284 : vector<16x128xf32>
    %286 = vector.broadcast %64 : f32 to vector<16x128xf32>
    %287 = arith.mulf %285, %286 : vector<16x128xf32>
    %288 = arith.addf %255, %287 : vector<16x128xf32>
    %289 = vector.broadcast %65 : f32 to vector<16x128xf32>
    %290 = arith.mulf %285, %289 : vector<16x128xf32>
    %291 = arith.addf %258, %290 : vector<16x128xf32>
    %292 = vector.broadcast %66 : f32 to vector<16x128xf32>
    %293 = arith.mulf %285, %292 : vector<16x128xf32>
    %294 = arith.addf %261, %293 : vector<16x128xf32>
    %295 = vector.broadcast %67 : f32 to vector<16x128xf32>
    %296 = arith.mulf %285, %295 : vector<16x128xf32>
    %297 = arith.addf %264, %296 : vector<16x128xf32>
    %298 = vector.broadcast %68 : f32 to vector<16x128xf32>
    %299 = arith.mulf %285, %298 : vector<16x128xf32>
    %300 = arith.addf %267, %299 : vector<16x128xf32>
    %301 = vector.broadcast %69 : f32 to vector<16x128xf32>
    %302 = arith.mulf %285, %301 : vector<16x128xf32>
    %303 = arith.addf %270, %302 : vector<16x128xf32>
    %304 = vector.broadcast %70 : f32 to vector<16x128xf32>
    %305 = arith.mulf %285, %304 : vector<16x128xf32>
    %306 = arith.addf %273, %305 : vector<16x128xf32>
    %307 = vector.broadcast %71 : f32 to vector<16x128xf32>
    %308 = arith.mulf %285, %307 : vector<16x128xf32>
    %309 = arith.addf %276, %308 : vector<16x128xf32>
    %310 = vector.broadcast %3 : f32 to vector<16x128xf32>
    %311 = arith.mulf %199, %310 : vector<16x128xf32>
    %312 = vector.broadcast %19 : f32 to vector<16x128xf32>
    %313 = arith.mulf %202, %312 : vector<16x128xf32>
    %314 = arith.addf %311, %313 : vector<16x128xf32>
    %315 = vector.broadcast %35 : f32 to vector<16x128xf32>
    %316 = arith.addf %314, %315 : vector<16x128xf32>
    %cst_7 = arith.constant 0.000000e+00 : f32
    %317 = vector.broadcast %cst_7 : f32 to vector<16x128xf32>
    %318 = arith.maximumf %316, %317 : vector<16x128xf32>
    %319 = vector.broadcast %72 : f32 to vector<16x128xf32>
    %320 = arith.mulf %318, %319 : vector<16x128xf32>
    %321 = arith.addf %288, %320 : vector<16x128xf32>
    %322 = vector.broadcast %73 : f32 to vector<16x128xf32>
    %323 = arith.mulf %318, %322 : vector<16x128xf32>
    %324 = arith.addf %291, %323 : vector<16x128xf32>
    %325 = vector.broadcast %74 : f32 to vector<16x128xf32>
    %326 = arith.mulf %318, %325 : vector<16x128xf32>
    %327 = arith.addf %294, %326 : vector<16x128xf32>
    %328 = vector.broadcast %75 : f32 to vector<16x128xf32>
    %329 = arith.mulf %318, %328 : vector<16x128xf32>
    %330 = arith.addf %297, %329 : vector<16x128xf32>
    %331 = vector.broadcast %76 : f32 to vector<16x128xf32>
    %332 = arith.mulf %318, %331 : vector<16x128xf32>
    %333 = arith.addf %300, %332 : vector<16x128xf32>
    %334 = vector.broadcast %77 : f32 to vector<16x128xf32>
    %335 = arith.mulf %318, %334 : vector<16x128xf32>
    %336 = arith.addf %303, %335 : vector<16x128xf32>
    %337 = vector.broadcast %78 : f32 to vector<16x128xf32>
    %338 = arith.mulf %318, %337 : vector<16x128xf32>
    %339 = arith.addf %306, %338 : vector<16x128xf32>
    %340 = vector.broadcast %79 : f32 to vector<16x128xf32>
    %341 = arith.mulf %318, %340 : vector<16x128xf32>
    %342 = arith.addf %309, %341 : vector<16x128xf32>
    %343 = vector.broadcast %4 : f32 to vector<16x128xf32>
    %344 = arith.mulf %199, %343 : vector<16x128xf32>
    %345 = vector.broadcast %20 : f32 to vector<16x128xf32>
    %346 = arith.mulf %202, %345 : vector<16x128xf32>
    %347 = arith.addf %344, %346 : vector<16x128xf32>
    %348 = vector.broadcast %36 : f32 to vector<16x128xf32>
    %349 = arith.addf %347, %348 : vector<16x128xf32>
    %cst_8 = arith.constant 0.000000e+00 : f32
    %350 = vector.broadcast %cst_8 : f32 to vector<16x128xf32>
    %351 = arith.maximumf %349, %350 : vector<16x128xf32>
    %352 = vector.broadcast %80 : f32 to vector<16x128xf32>
    %353 = arith.mulf %351, %352 : vector<16x128xf32>
    %354 = arith.addf %321, %353 : vector<16x128xf32>
    %355 = vector.broadcast %81 : f32 to vector<16x128xf32>
    %356 = arith.mulf %351, %355 : vector<16x128xf32>
    %357 = arith.addf %324, %356 : vector<16x128xf32>
    %358 = vector.broadcast %82 : f32 to vector<16x128xf32>
    %359 = arith.mulf %351, %358 : vector<16x128xf32>
    %360 = arith.addf %327, %359 : vector<16x128xf32>
    %361 = vector.broadcast %83 : f32 to vector<16x128xf32>
    %362 = arith.mulf %351, %361 : vector<16x128xf32>
    %363 = arith.addf %330, %362 : vector<16x128xf32>
    %364 = vector.broadcast %84 : f32 to vector<16x128xf32>
    %365 = arith.mulf %351, %364 : vector<16x128xf32>
    %366 = arith.addf %333, %365 : vector<16x128xf32>
    %367 = vector.broadcast %85 : f32 to vector<16x128xf32>
    %368 = arith.mulf %351, %367 : vector<16x128xf32>
    %369 = arith.addf %336, %368 : vector<16x128xf32>
    %370 = vector.broadcast %86 : f32 to vector<16x128xf32>
    %371 = arith.mulf %351, %370 : vector<16x128xf32>
    %372 = arith.addf %339, %371 : vector<16x128xf32>
    %373 = vector.broadcast %87 : f32 to vector<16x128xf32>
    %374 = arith.mulf %351, %373 : vector<16x128xf32>
    %375 = arith.addf %342, %374 : vector<16x128xf32>
    %376 = vector.broadcast %5 : f32 to vector<16x128xf32>
    %377 = arith.mulf %199, %376 : vector<16x128xf32>
    %378 = vector.broadcast %21 : f32 to vector<16x128xf32>
    %379 = arith.mulf %202, %378 : vector<16x128xf32>
    %380 = arith.addf %377, %379 : vector<16x128xf32>
    %381 = vector.broadcast %37 : f32 to vector<16x128xf32>
    %382 = arith.addf %380, %381 : vector<16x128xf32>
    %cst_9 = arith.constant 0.000000e+00 : f32
    %383 = vector.broadcast %cst_9 : f32 to vector<16x128xf32>
    %384 = arith.maximumf %382, %383 : vector<16x128xf32>
    %385 = vector.broadcast %88 : f32 to vector<16x128xf32>
    %386 = arith.mulf %384, %385 : vector<16x128xf32>
    %387 = arith.addf %354, %386 : vector<16x128xf32>
    %388 = vector.broadcast %89 : f32 to vector<16x128xf32>
    %389 = arith.mulf %384, %388 : vector<16x128xf32>
    %390 = arith.addf %357, %389 : vector<16x128xf32>
    %391 = vector.broadcast %90 : f32 to vector<16x128xf32>
    %392 = arith.mulf %384, %391 : vector<16x128xf32>
    %393 = arith.addf %360, %392 : vector<16x128xf32>
    %394 = vector.broadcast %91 : f32 to vector<16x128xf32>
    %395 = arith.mulf %384, %394 : vector<16x128xf32>
    %396 = arith.addf %363, %395 : vector<16x128xf32>
    %397 = vector.broadcast %92 : f32 to vector<16x128xf32>
    %398 = arith.mulf %384, %397 : vector<16x128xf32>
    %399 = arith.addf %366, %398 : vector<16x128xf32>
    %400 = vector.broadcast %93 : f32 to vector<16x128xf32>
    %401 = arith.mulf %384, %400 : vector<16x128xf32>
    %402 = arith.addf %369, %401 : vector<16x128xf32>
    %403 = vector.broadcast %94 : f32 to vector<16x128xf32>
    %404 = arith.mulf %384, %403 : vector<16x128xf32>
    %405 = arith.addf %372, %404 : vector<16x128xf32>
    %406 = vector.broadcast %95 : f32 to vector<16x128xf32>
    %407 = arith.mulf %384, %406 : vector<16x128xf32>
    %408 = arith.addf %375, %407 : vector<16x128xf32>
    %409 = vector.broadcast %6 : f32 to vector<16x128xf32>
    %410 = arith.mulf %199, %409 : vector<16x128xf32>
    %411 = vector.broadcast %22 : f32 to vector<16x128xf32>
    %412 = arith.mulf %202, %411 : vector<16x128xf32>
    %413 = arith.addf %410, %412 : vector<16x128xf32>
    %414 = vector.broadcast %38 : f32 to vector<16x128xf32>
    %415 = arith.addf %413, %414 : vector<16x128xf32>
    %cst_10 = arith.constant 0.000000e+00 : f32
    %416 = vector.broadcast %cst_10 : f32 to vector<16x128xf32>
    %417 = arith.maximumf %415, %416 : vector<16x128xf32>
    %418 = vector.broadcast %96 : f32 to vector<16x128xf32>
    %419 = arith.mulf %417, %418 : vector<16x128xf32>
    %420 = arith.addf %387, %419 : vector<16x128xf32>
    %421 = vector.broadcast %97 : f32 to vector<16x128xf32>
    %422 = arith.mulf %417, %421 : vector<16x128xf32>
    %423 = arith.addf %390, %422 : vector<16x128xf32>
    %424 = vector.broadcast %98 : f32 to vector<16x128xf32>
    %425 = arith.mulf %417, %424 : vector<16x128xf32>
    %426 = arith.addf %393, %425 : vector<16x128xf32>
    %427 = vector.broadcast %99 : f32 to vector<16x128xf32>
    %428 = arith.mulf %417, %427 : vector<16x128xf32>
    %429 = arith.addf %396, %428 : vector<16x128xf32>
    %430 = vector.broadcast %100 : f32 to vector<16x128xf32>
    %431 = arith.mulf %417, %430 : vector<16x128xf32>
    %432 = arith.addf %399, %431 : vector<16x128xf32>
    %433 = vector.broadcast %101 : f32 to vector<16x128xf32>
    %434 = arith.mulf %417, %433 : vector<16x128xf32>
    %435 = arith.addf %402, %434 : vector<16x128xf32>
    %436 = vector.broadcast %102 : f32 to vector<16x128xf32>
    %437 = arith.mulf %417, %436 : vector<16x128xf32>
    %438 = arith.addf %405, %437 : vector<16x128xf32>
    %439 = vector.broadcast %103 : f32 to vector<16x128xf32>
    %440 = arith.mulf %417, %439 : vector<16x128xf32>
    %441 = arith.addf %408, %440 : vector<16x128xf32>
    %442 = vector.broadcast %7 : f32 to vector<16x128xf32>
    %443 = arith.mulf %199, %442 : vector<16x128xf32>
    %444 = vector.broadcast %23 : f32 to vector<16x128xf32>
    %445 = arith.mulf %202, %444 : vector<16x128xf32>
    %446 = arith.addf %443, %445 : vector<16x128xf32>
    %447 = vector.broadcast %39 : f32 to vector<16x128xf32>
    %448 = arith.addf %446, %447 : vector<16x128xf32>
    %cst_11 = arith.constant 0.000000e+00 : f32
    %449 = vector.broadcast %cst_11 : f32 to vector<16x128xf32>
    %450 = arith.maximumf %448, %449 : vector<16x128xf32>
    %451 = vector.broadcast %104 : f32 to vector<16x128xf32>
    %452 = arith.mulf %450, %451 : vector<16x128xf32>
    %453 = arith.addf %420, %452 : vector<16x128xf32>
    %454 = vector.broadcast %105 : f32 to vector<16x128xf32>
    %455 = arith.mulf %450, %454 : vector<16x128xf32>
    %456 = arith.addf %423, %455 : vector<16x128xf32>
    %457 = vector.broadcast %106 : f32 to vector<16x128xf32>
    %458 = arith.mulf %450, %457 : vector<16x128xf32>
    %459 = arith.addf %426, %458 : vector<16x128xf32>
    %460 = vector.broadcast %107 : f32 to vector<16x128xf32>
    %461 = arith.mulf %450, %460 : vector<16x128xf32>
    %462 = arith.addf %429, %461 : vector<16x128xf32>
    %463 = vector.broadcast %108 : f32 to vector<16x128xf32>
    %464 = arith.mulf %450, %463 : vector<16x128xf32>
    %465 = arith.addf %432, %464 : vector<16x128xf32>
    %466 = vector.broadcast %109 : f32 to vector<16x128xf32>
    %467 = arith.mulf %450, %466 : vector<16x128xf32>
    %468 = arith.addf %435, %467 : vector<16x128xf32>
    %469 = vector.broadcast %110 : f32 to vector<16x128xf32>
    %470 = arith.mulf %450, %469 : vector<16x128xf32>
    %471 = arith.addf %438, %470 : vector<16x128xf32>
    %472 = vector.broadcast %111 : f32 to vector<16x128xf32>
    %473 = arith.mulf %450, %472 : vector<16x128xf32>
    %474 = arith.addf %441, %473 : vector<16x128xf32>
    %475 = vector.broadcast %8 : f32 to vector<16x128xf32>
    %476 = arith.mulf %199, %475 : vector<16x128xf32>
    %477 = vector.broadcast %24 : f32 to vector<16x128xf32>
    %478 = arith.mulf %202, %477 : vector<16x128xf32>
    %479 = arith.addf %476, %478 : vector<16x128xf32>
    %480 = vector.broadcast %40 : f32 to vector<16x128xf32>
    %481 = arith.addf %479, %480 : vector<16x128xf32>
    %cst_12 = arith.constant 0.000000e+00 : f32
    %482 = vector.broadcast %cst_12 : f32 to vector<16x128xf32>
    %483 = arith.maximumf %481, %482 : vector<16x128xf32>
    %484 = vector.broadcast %112 : f32 to vector<16x128xf32>
    %485 = arith.mulf %483, %484 : vector<16x128xf32>
    %486 = arith.addf %453, %485 : vector<16x128xf32>
    %487 = vector.broadcast %113 : f32 to vector<16x128xf32>
    %488 = arith.mulf %483, %487 : vector<16x128xf32>
    %489 = arith.addf %456, %488 : vector<16x128xf32>
    %490 = vector.broadcast %114 : f32 to vector<16x128xf32>
    %491 = arith.mulf %483, %490 : vector<16x128xf32>
    %492 = arith.addf %459, %491 : vector<16x128xf32>
    %493 = vector.broadcast %115 : f32 to vector<16x128xf32>
    %494 = arith.mulf %483, %493 : vector<16x128xf32>
    %495 = arith.addf %462, %494 : vector<16x128xf32>
    %496 = vector.broadcast %116 : f32 to vector<16x128xf32>
    %497 = arith.mulf %483, %496 : vector<16x128xf32>
    %498 = arith.addf %465, %497 : vector<16x128xf32>
    %499 = vector.broadcast %117 : f32 to vector<16x128xf32>
    %500 = arith.mulf %483, %499 : vector<16x128xf32>
    %501 = arith.addf %468, %500 : vector<16x128xf32>
    %502 = vector.broadcast %118 : f32 to vector<16x128xf32>
    %503 = arith.mulf %483, %502 : vector<16x128xf32>
    %504 = arith.addf %471, %503 : vector<16x128xf32>
    %505 = vector.broadcast %119 : f32 to vector<16x128xf32>
    %506 = arith.mulf %483, %505 : vector<16x128xf32>
    %507 = arith.addf %474, %506 : vector<16x128xf32>
    %508 = vector.broadcast %9 : f32 to vector<16x128xf32>
    %509 = arith.mulf %199, %508 : vector<16x128xf32>
    %510 = vector.broadcast %25 : f32 to vector<16x128xf32>
    %511 = arith.mulf %202, %510 : vector<16x128xf32>
    %512 = arith.addf %509, %511 : vector<16x128xf32>
    %513 = vector.broadcast %41 : f32 to vector<16x128xf32>
    %514 = arith.addf %512, %513 : vector<16x128xf32>
    %cst_13 = arith.constant 0.000000e+00 : f32
    %515 = vector.broadcast %cst_13 : f32 to vector<16x128xf32>
    %516 = arith.maximumf %514, %515 : vector<16x128xf32>
    %517 = vector.broadcast %120 : f32 to vector<16x128xf32>
    %518 = arith.mulf %516, %517 : vector<16x128xf32>
    %519 = arith.addf %486, %518 : vector<16x128xf32>
    %520 = vector.broadcast %121 : f32 to vector<16x128xf32>
    %521 = arith.mulf %516, %520 : vector<16x128xf32>
    %522 = arith.addf %489, %521 : vector<16x128xf32>
    %523 = vector.broadcast %122 : f32 to vector<16x128xf32>
    %524 = arith.mulf %516, %523 : vector<16x128xf32>
    %525 = arith.addf %492, %524 : vector<16x128xf32>
    %526 = vector.broadcast %123 : f32 to vector<16x128xf32>
    %527 = arith.mulf %516, %526 : vector<16x128xf32>
    %528 = arith.addf %495, %527 : vector<16x128xf32>
    %529 = vector.broadcast %124 : f32 to vector<16x128xf32>
    %530 = arith.mulf %516, %529 : vector<16x128xf32>
    %531 = arith.addf %498, %530 : vector<16x128xf32>
    %532 = vector.broadcast %125 : f32 to vector<16x128xf32>
    %533 = arith.mulf %516, %532 : vector<16x128xf32>
    %534 = arith.addf %501, %533 : vector<16x128xf32>
    %535 = vector.broadcast %126 : f32 to vector<16x128xf32>
    %536 = arith.mulf %516, %535 : vector<16x128xf32>
    %537 = arith.addf %504, %536 : vector<16x128xf32>
    %538 = vector.broadcast %127 : f32 to vector<16x128xf32>
    %539 = arith.mulf %516, %538 : vector<16x128xf32>
    %540 = arith.addf %507, %539 : vector<16x128xf32>
    %541 = vector.broadcast %10 : f32 to vector<16x128xf32>
    %542 = arith.mulf %199, %541 : vector<16x128xf32>
    %543 = vector.broadcast %26 : f32 to vector<16x128xf32>
    %544 = arith.mulf %202, %543 : vector<16x128xf32>
    %545 = arith.addf %542, %544 : vector<16x128xf32>
    %546 = vector.broadcast %42 : f32 to vector<16x128xf32>
    %547 = arith.addf %545, %546 : vector<16x128xf32>
    %cst_14 = arith.constant 0.000000e+00 : f32
    %548 = vector.broadcast %cst_14 : f32 to vector<16x128xf32>
    %549 = arith.maximumf %547, %548 : vector<16x128xf32>
    %550 = vector.broadcast %128 : f32 to vector<16x128xf32>
    %551 = arith.mulf %549, %550 : vector<16x128xf32>
    %552 = arith.addf %519, %551 : vector<16x128xf32>
    %553 = vector.broadcast %129 : f32 to vector<16x128xf32>
    %554 = arith.mulf %549, %553 : vector<16x128xf32>
    %555 = arith.addf %522, %554 : vector<16x128xf32>
    %556 = vector.broadcast %130 : f32 to vector<16x128xf32>
    %557 = arith.mulf %549, %556 : vector<16x128xf32>
    %558 = arith.addf %525, %557 : vector<16x128xf32>
    %559 = vector.broadcast %131 : f32 to vector<16x128xf32>
    %560 = arith.mulf %549, %559 : vector<16x128xf32>
    %561 = arith.addf %528, %560 : vector<16x128xf32>
    %562 = vector.broadcast %132 : f32 to vector<16x128xf32>
    %563 = arith.mulf %549, %562 : vector<16x128xf32>
    %564 = arith.addf %531, %563 : vector<16x128xf32>
    %565 = vector.broadcast %133 : f32 to vector<16x128xf32>
    %566 = arith.mulf %549, %565 : vector<16x128xf32>
    %567 = arith.addf %534, %566 : vector<16x128xf32>
    %568 = vector.broadcast %134 : f32 to vector<16x128xf32>
    %569 = arith.mulf %549, %568 : vector<16x128xf32>
    %570 = arith.addf %537, %569 : vector<16x128xf32>
    %571 = vector.broadcast %135 : f32 to vector<16x128xf32>
    %572 = arith.mulf %549, %571 : vector<16x128xf32>
    %573 = arith.addf %540, %572 : vector<16x128xf32>
    %574 = vector.broadcast %11 : f32 to vector<16x128xf32>
    %575 = arith.mulf %199, %574 : vector<16x128xf32>
    %576 = vector.broadcast %27 : f32 to vector<16x128xf32>
    %577 = arith.mulf %202, %576 : vector<16x128xf32>
    %578 = arith.addf %575, %577 : vector<16x128xf32>
    %579 = vector.broadcast %43 : f32 to vector<16x128xf32>
    %580 = arith.addf %578, %579 : vector<16x128xf32>
    %cst_15 = arith.constant 0.000000e+00 : f32
    %581 = vector.broadcast %cst_15 : f32 to vector<16x128xf32>
    %582 = arith.maximumf %580, %581 : vector<16x128xf32>
    %583 = vector.broadcast %136 : f32 to vector<16x128xf32>
    %584 = arith.mulf %582, %583 : vector<16x128xf32>
    %585 = arith.addf %552, %584 : vector<16x128xf32>
    %586 = vector.broadcast %137 : f32 to vector<16x128xf32>
    %587 = arith.mulf %582, %586 : vector<16x128xf32>
    %588 = arith.addf %555, %587 : vector<16x128xf32>
    %589 = vector.broadcast %138 : f32 to vector<16x128xf32>
    %590 = arith.mulf %582, %589 : vector<16x128xf32>
    %591 = arith.addf %558, %590 : vector<16x128xf32>
    %592 = vector.broadcast %139 : f32 to vector<16x128xf32>
    %593 = arith.mulf %582, %592 : vector<16x128xf32>
    %594 = arith.addf %561, %593 : vector<16x128xf32>
    %595 = vector.broadcast %140 : f32 to vector<16x128xf32>
    %596 = arith.mulf %582, %595 : vector<16x128xf32>
    %597 = arith.addf %564, %596 : vector<16x128xf32>
    %598 = vector.broadcast %141 : f32 to vector<16x128xf32>
    %599 = arith.mulf %582, %598 : vector<16x128xf32>
    %600 = arith.addf %567, %599 : vector<16x128xf32>
    %601 = vector.broadcast %142 : f32 to vector<16x128xf32>
    %602 = arith.mulf %582, %601 : vector<16x128xf32>
    %603 = arith.addf %570, %602 : vector<16x128xf32>
    %604 = vector.broadcast %143 : f32 to vector<16x128xf32>
    %605 = arith.mulf %582, %604 : vector<16x128xf32>
    %606 = arith.addf %573, %605 : vector<16x128xf32>
    %607 = vector.broadcast %12 : f32 to vector<16x128xf32>
    %608 = arith.mulf %199, %607 : vector<16x128xf32>
    %609 = vector.broadcast %28 : f32 to vector<16x128xf32>
    %610 = arith.mulf %202, %609 : vector<16x128xf32>
    %611 = arith.addf %608, %610 : vector<16x128xf32>
    %612 = vector.broadcast %44 : f32 to vector<16x128xf32>
    %613 = arith.addf %611, %612 : vector<16x128xf32>
    %cst_16 = arith.constant 0.000000e+00 : f32
    %614 = vector.broadcast %cst_16 : f32 to vector<16x128xf32>
    %615 = arith.maximumf %613, %614 : vector<16x128xf32>
    %616 = vector.broadcast %144 : f32 to vector<16x128xf32>
    %617 = arith.mulf %615, %616 : vector<16x128xf32>
    %618 = arith.addf %585, %617 : vector<16x128xf32>
    %619 = vector.broadcast %145 : f32 to vector<16x128xf32>
    %620 = arith.mulf %615, %619 : vector<16x128xf32>
    %621 = arith.addf %588, %620 : vector<16x128xf32>
    %622 = vector.broadcast %146 : f32 to vector<16x128xf32>
    %623 = arith.mulf %615, %622 : vector<16x128xf32>
    %624 = arith.addf %591, %623 : vector<16x128xf32>
    %625 = vector.broadcast %147 : f32 to vector<16x128xf32>
    %626 = arith.mulf %615, %625 : vector<16x128xf32>
    %627 = arith.addf %594, %626 : vector<16x128xf32>
    %628 = vector.broadcast %148 : f32 to vector<16x128xf32>
    %629 = arith.mulf %615, %628 : vector<16x128xf32>
    %630 = arith.addf %597, %629 : vector<16x128xf32>
    %631 = vector.broadcast %149 : f32 to vector<16x128xf32>
    %632 = arith.mulf %615, %631 : vector<16x128xf32>
    %633 = arith.addf %600, %632 : vector<16x128xf32>
    %634 = vector.broadcast %150 : f32 to vector<16x128xf32>
    %635 = arith.mulf %615, %634 : vector<16x128xf32>
    %636 = arith.addf %603, %635 : vector<16x128xf32>
    %637 = vector.broadcast %151 : f32 to vector<16x128xf32>
    %638 = arith.mulf %615, %637 : vector<16x128xf32>
    %639 = arith.addf %606, %638 : vector<16x128xf32>
    %640 = vector.broadcast %13 : f32 to vector<16x128xf32>
    %641 = arith.mulf %199, %640 : vector<16x128xf32>
    %642 = vector.broadcast %29 : f32 to vector<16x128xf32>
    %643 = arith.mulf %202, %642 : vector<16x128xf32>
    %644 = arith.addf %641, %643 : vector<16x128xf32>
    %645 = vector.broadcast %45 : f32 to vector<16x128xf32>
    %646 = arith.addf %644, %645 : vector<16x128xf32>
    %cst_17 = arith.constant 0.000000e+00 : f32
    %647 = vector.broadcast %cst_17 : f32 to vector<16x128xf32>
    %648 = arith.maximumf %646, %647 : vector<16x128xf32>
    %649 = vector.broadcast %152 : f32 to vector<16x128xf32>
    %650 = arith.mulf %648, %649 : vector<16x128xf32>
    %651 = arith.addf %618, %650 : vector<16x128xf32>
    %652 = vector.broadcast %153 : f32 to vector<16x128xf32>
    %653 = arith.mulf %648, %652 : vector<16x128xf32>
    %654 = arith.addf %621, %653 : vector<16x128xf32>
    %655 = vector.broadcast %154 : f32 to vector<16x128xf32>
    %656 = arith.mulf %648, %655 : vector<16x128xf32>
    %657 = arith.addf %624, %656 : vector<16x128xf32>
    %658 = vector.broadcast %155 : f32 to vector<16x128xf32>
    %659 = arith.mulf %648, %658 : vector<16x128xf32>
    %660 = arith.addf %627, %659 : vector<16x128xf32>
    %661 = vector.broadcast %156 : f32 to vector<16x128xf32>
    %662 = arith.mulf %648, %661 : vector<16x128xf32>
    %663 = arith.addf %630, %662 : vector<16x128xf32>
    %664 = vector.broadcast %157 : f32 to vector<16x128xf32>
    %665 = arith.mulf %648, %664 : vector<16x128xf32>
    %666 = arith.addf %633, %665 : vector<16x128xf32>
    %667 = vector.broadcast %158 : f32 to vector<16x128xf32>
    %668 = arith.mulf %648, %667 : vector<16x128xf32>
    %669 = arith.addf %636, %668 : vector<16x128xf32>
    %670 = vector.broadcast %159 : f32 to vector<16x128xf32>
    %671 = arith.mulf %648, %670 : vector<16x128xf32>
    %672 = arith.addf %639, %671 : vector<16x128xf32>
    %673 = vector.broadcast %14 : f32 to vector<16x128xf32>
    %674 = arith.mulf %199, %673 : vector<16x128xf32>
    %675 = vector.broadcast %30 : f32 to vector<16x128xf32>
    %676 = arith.mulf %202, %675 : vector<16x128xf32>
    %677 = arith.addf %674, %676 : vector<16x128xf32>
    %678 = vector.broadcast %46 : f32 to vector<16x128xf32>
    %679 = arith.addf %677, %678 : vector<16x128xf32>
    %cst_18 = arith.constant 0.000000e+00 : f32
    %680 = vector.broadcast %cst_18 : f32 to vector<16x128xf32>
    %681 = arith.maximumf %679, %680 : vector<16x128xf32>
    %682 = vector.broadcast %160 : f32 to vector<16x128xf32>
    %683 = arith.mulf %681, %682 : vector<16x128xf32>
    %684 = arith.addf %651, %683 : vector<16x128xf32>
    %685 = vector.broadcast %161 : f32 to vector<16x128xf32>
    %686 = arith.mulf %681, %685 : vector<16x128xf32>
    %687 = arith.addf %654, %686 : vector<16x128xf32>
    %688 = vector.broadcast %162 : f32 to vector<16x128xf32>
    %689 = arith.mulf %681, %688 : vector<16x128xf32>
    %690 = arith.addf %657, %689 : vector<16x128xf32>
    %691 = vector.broadcast %163 : f32 to vector<16x128xf32>
    %692 = arith.mulf %681, %691 : vector<16x128xf32>
    %693 = arith.addf %660, %692 : vector<16x128xf32>
    %694 = vector.broadcast %164 : f32 to vector<16x128xf32>
    %695 = arith.mulf %681, %694 : vector<16x128xf32>
    %696 = arith.addf %663, %695 : vector<16x128xf32>
    %697 = vector.broadcast %165 : f32 to vector<16x128xf32>
    %698 = arith.mulf %681, %697 : vector<16x128xf32>
    %699 = arith.addf %666, %698 : vector<16x128xf32>
    %700 = vector.broadcast %166 : f32 to vector<16x128xf32>
    %701 = arith.mulf %681, %700 : vector<16x128xf32>
    %702 = arith.addf %669, %701 : vector<16x128xf32>
    %703 = vector.broadcast %167 : f32 to vector<16x128xf32>
    %704 = arith.mulf %681, %703 : vector<16x128xf32>
    %705 = arith.addf %672, %704 : vector<16x128xf32>
    %706 = vector.broadcast %15 : f32 to vector<16x128xf32>
    %707 = arith.mulf %199, %706 : vector<16x128xf32>
    %708 = vector.broadcast %31 : f32 to vector<16x128xf32>
    %709 = arith.mulf %202, %708 : vector<16x128xf32>
    %710 = arith.addf %707, %709 : vector<16x128xf32>
    %711 = vector.broadcast %47 : f32 to vector<16x128xf32>
    %712 = arith.addf %710, %711 : vector<16x128xf32>
    %cst_19 = arith.constant 0.000000e+00 : f32
    %713 = vector.broadcast %cst_19 : f32 to vector<16x128xf32>
    %714 = arith.maximumf %712, %713 : vector<16x128xf32>
    %715 = vector.broadcast %168 : f32 to vector<16x128xf32>
    %716 = arith.mulf %714, %715 : vector<16x128xf32>
    %717 = arith.addf %684, %716 : vector<16x128xf32>
    %718 = vector.broadcast %169 : f32 to vector<16x128xf32>
    %719 = arith.mulf %714, %718 : vector<16x128xf32>
    %720 = arith.addf %687, %719 : vector<16x128xf32>
    %721 = vector.broadcast %170 : f32 to vector<16x128xf32>
    %722 = arith.mulf %714, %721 : vector<16x128xf32>
    %723 = arith.addf %690, %722 : vector<16x128xf32>
    %724 = vector.broadcast %171 : f32 to vector<16x128xf32>
    %725 = arith.mulf %714, %724 : vector<16x128xf32>
    %726 = arith.addf %693, %725 : vector<16x128xf32>
    %727 = vector.broadcast %172 : f32 to vector<16x128xf32>
    %728 = arith.mulf %714, %727 : vector<16x128xf32>
    %729 = arith.addf %696, %728 : vector<16x128xf32>
    %730 = vector.broadcast %173 : f32 to vector<16x128xf32>
    %731 = arith.mulf %714, %730 : vector<16x128xf32>
    %732 = arith.addf %699, %731 : vector<16x128xf32>
    %733 = vector.broadcast %174 : f32 to vector<16x128xf32>
    %734 = arith.mulf %714, %733 : vector<16x128xf32>
    %735 = arith.addf %702, %734 : vector<16x128xf32>
    %736 = vector.broadcast %175 : f32 to vector<16x128xf32>
    %737 = arith.mulf %714, %736 : vector<16x128xf32>
    %738 = arith.addf %705, %737 : vector<16x128xf32>
    %cst_20 = arith.constant 0.000000e+00 : f32
    %739 = vector.broadcast %cst_20 : f32 to vector<16x128xf32>
    %740 = arith.maximumf %717, %739 : vector<16x128xf32>
    %741 = vector.broadcast %184 : f32 to vector<16x128xf32>
    %742 = arith.mulf %740, %741 : vector<16x128xf32>
    %743 = vector.broadcast %192 : f32 to vector<16x128xf32>
    %744 = arith.addf %743, %742 : vector<16x128xf32>
    %cst_21 = arith.constant 0.000000e+00 : f32
    %745 = vector.broadcast %cst_21 : f32 to vector<16x128xf32>
    %746 = arith.maximumf %720, %745 : vector<16x128xf32>
    %747 = vector.broadcast %185 : f32 to vector<16x128xf32>
    %748 = arith.mulf %746, %747 : vector<16x128xf32>
    %749 = arith.addf %744, %748 : vector<16x128xf32>
    %cst_22 = arith.constant 0.000000e+00 : f32
    %750 = vector.broadcast %cst_22 : f32 to vector<16x128xf32>
    %751 = arith.maximumf %723, %750 : vector<16x128xf32>
    %752 = vector.broadcast %186 : f32 to vector<16x128xf32>
    %753 = arith.mulf %751, %752 : vector<16x128xf32>
    %754 = arith.addf %749, %753 : vector<16x128xf32>
    %cst_23 = arith.constant 0.000000e+00 : f32
    %755 = vector.broadcast %cst_23 : f32 to vector<16x128xf32>
    %756 = arith.maximumf %726, %755 : vector<16x128xf32>
    %757 = vector.broadcast %187 : f32 to vector<16x128xf32>
    %758 = arith.mulf %756, %757 : vector<16x128xf32>
    %759 = arith.addf %754, %758 : vector<16x128xf32>
    %cst_24 = arith.constant 0.000000e+00 : f32
    %760 = vector.broadcast %cst_24 : f32 to vector<16x128xf32>
    %761 = arith.maximumf %729, %760 : vector<16x128xf32>
    %762 = vector.broadcast %188 : f32 to vector<16x128xf32>
    %763 = arith.mulf %761, %762 : vector<16x128xf32>
    %764 = arith.addf %759, %763 : vector<16x128xf32>
    %cst_25 = arith.constant 0.000000e+00 : f32
    %765 = vector.broadcast %cst_25 : f32 to vector<16x128xf32>
    %766 = arith.maximumf %732, %765 : vector<16x128xf32>
    %767 = vector.broadcast %189 : f32 to vector<16x128xf32>
    %768 = arith.mulf %766, %767 : vector<16x128xf32>
    %769 = arith.addf %764, %768 : vector<16x128xf32>
    %cst_26 = arith.constant 0.000000e+00 : f32
    %770 = vector.broadcast %cst_26 : f32 to vector<16x128xf32>
    %771 = arith.maximumf %735, %770 : vector<16x128xf32>
    %772 = vector.broadcast %190 : f32 to vector<16x128xf32>
    %773 = arith.mulf %771, %772 : vector<16x128xf32>
    %774 = arith.addf %769, %773 : vector<16x128xf32>
    %cst_27 = arith.constant 0.000000e+00 : f32
    %775 = vector.broadcast %cst_27 : f32 to vector<16x128xf32>
    %776 = arith.maximumf %738, %775 : vector<16x128xf32>
    %777 = vector.broadcast %191 : f32 to vector<16x128xf32>
    %778 = arith.mulf %776, %777 : vector<16x128xf32>
    %779 = arith.addf %774, %778 : vector<16x128xf32>
    %780 = arith.index_cast %196 : i32 to index
    %c0_28 = arith.constant 0 : index
    %781 = vector.load %arg3[%780, %c0_28] : memref<16x128xf32, #tpu.memory_space<vmem>>, vector<16x128xf32>
    tpu.vector_store %arg3[%780, %c0_28], %779 {strides = array<i32>} : memref<16x128xf32, #tpu.memory_space<vmem>>, vector<16x128xf32>,
    %c1_i32_29 = arith.constant 1 : i32
    return
  }
  func.func @transform_0(%arg0: i32) -> i32 {
    %c0_i32 = arith.constant 0 : i32
    %c0_i32_0 = arith.constant 0 : i32
    return %c0_i32 : i32
  }
  func.func @transform_1(%arg0: i32) -> (i32, i32, i32) {
    %c0_i32 = arith.constant 0 : i32
    %c0_i32_0 = arith.constant 0 : i32
    %c0_i32_1 = arith.constant 0 : i32
    return %c0_i32, %arg0, %c0_i32_0 : i32, i32, i32
  }
  func.func @transform_2(%arg0: i32) -> (i32, i32) {
    %c0_i32 = arith.constant 0 : i32
    %c0_i32_0 = arith.constant 0 : i32
    return %arg0, %c0_i32 : i32, i32
  }
}

</mosaic_0001>

<llo_original>
// kernel: classical_mlp_forward.1
$region0: #{classical_mlp_forward.1}
  #allocation0 [shape = 'u32[]', space=smem, size = 0x4, offset = 0x4, fixed_abs, tag = 'smem constant byte address 0x4 - core index']
  #allocation1 [shape = 'u32[72,128]{1,0:T(1,128)}', space=vmem, size = 0x9000, scoped, tag = 'internal scratch']
  %s0 = inlined_call_operand.vmem [shape: f32[193], index: 0, kind: input, shape index: {}]
  %s1 = inlined_call_operand.vmem [shape: f32[2,16,128], index: 1, kind: input, shape index: {}]
  %s2 = inlined_call_operand.vmem [shape: f32[16,128], index: 2, kind: output, shape index: {}]
  %s3 = sld [smem:[#allocation0]]
  $region22: #{classical_mlp_forward.1} parent=0
    _
  %s5 = ssub.s32 1, %s3
  %s6 = scalar_select 0, %s5, %s3
  $region1: #{classical_mlp_forward.1} parent=0
    #allocation2 [shape = 'u8[1024]{0}', space=smem, size = 0x400, scoped, tag = 'input window, operand 0, single buffered']
    #allocation3 [shape = 's32[1]{0}', space=sflag, size = 0x4, scoped, tag = 'scoped memory for classical_mlp_forward.1']
    %7 = vsyncpa [#allocation3], 0
    // Predicated region
    $region2: #{classical_mlp_forward.1} parent=1 // pred_check
      _
    $region3: #{classical_mlp_forward.1} parent=1 // pred_check_branch
      %9 = sbr.rel (0) target = $region5
    $region4: #{classical_mlp_forward.1} parent=1 // pred_region
      %11 = vsyncadd [#allocation3], 0
      %s13 = sshll.u32 %s0, 4
      %s14 = int_to_ptr.vmem [resolvable:$true] %s13
      %16 = dma.vmem_to_smem %s14, 32, [#allocation2], [#allocation3]
    $region5: #{classical_mlp_forward.1} parent=1 // pred_fallthru
      _
    // Predicated region
    $region6: #{classical_mlp_forward.1} parent=1 // pred_check
      _
    $region7: #{classical_mlp_forward.1} parent=1 // pred_check_branch
      %18 = sbr.rel (0) target = $region9
    $region8: #{classical_mlp_forward.1} parent=1 // pred_region
      _
    $region9: #{classical_mlp_forward.1} parent=1 // pred_fallthru
      _
    // Predicated region
    $region10: #{classical_mlp_forward.1} parent=1 // pred_check
      _
    $region11: #{classical_mlp_forward.1} parent=1 // pred_check_branch
      %20 = sbr.rel (0) target = $region13
    $region12: #{classical_mlp_forward.1} parent=1 // pred_region
      %22 = dma.done [#allocation3], 32
    $region13: #{classical_mlp_forward.1} parent=1 // pred_fallthru
      _
    %23 = sfence
    %s24 = sld [smem:[#allocation2]]
    %s25 = sld [smem:[#allocation2 + $0x1]]
    %s26 = sld [smem:[#allocation2 + $0x2]]
    %s27 = sld [smem:[#allocation2 + $0x3]]
    %s28 = sld [smem:[#allocation2 + $0x4]]
    %s29 = sld [smem:[#allocation2 + $0x5]]
    %s30 = sld [smem:[#allocation2 + $0x6]]
    %s31 = sld [smem:[#allocation2 + $0x7]]
    %s32 = sld [smem:[#allocation2 + $0x8]]
    %s33 = sld [smem:[#allocation2 + $0x9]]
    %s34 = sld [smem:[#allocation2 + $0xa]]
    %s35 = sld [smem:[#allocation2 + $0xb]]
    %s36 = sld [smem:[#allocation2 + $0xc]]
    %s37 = sld [smem:[#allocation2 + $0xd]]
    %s38 = sld [smem:[#allocation2 + $0xe]]
    %s39 = sld [smem:[#allocation2 + $0xf]]
    %s40 = sld [smem:[#allocation2 + $0x10]]
    %s41 = sld [smem:[#allocation2 + $0x11]]
    %s42 = sld [smem:[#allocation2 + $0x12]]
    %s43 = sld [smem:[#allocation2 + $0x13]]
    %s44 = sld [smem:[#allocation2 + $0x14]]
    %s45 = sld [smem:[#allocation2 + $0x15]]
    %s46 = sld [smem:[#allocation2 + $0x16]]
    %s47 = sld [smem:[#allocation2 + $0x17]]
    %s48 = sld [smem:[#allocation2 + $0x18]]
    %s49 = sld [smem:[#allocation2 + $0x19]]
    %s50 = sld [smem:[#allocation2 + $0x1a]]
    %s51 = sld [smem:[#allocation2 + $0x1b]]
    %s52 = sld [smem:[#allocation2 + $0x1c]]
    %s53 = sld [smem:[#allocation2 + $0x1d]]
    %s54 = sld [smem:[#allocation2 + $0x1e]]
    %s55 = sld [smem:[#allocation2 + $0x1f]]
    %s56 = sld [smem:[#allocation2 + $0x20]]
    %s57 = sld [smem:[#allocation2 + $0x21]]
    %s58 = sld [smem:[#allocation2 + $0x22]]
    %s59 = sld [smem:[#allocation2 + $0x23]]
    %s60 = sld [smem:[#allocation2 + $0x24]]
    %s61 = sld [smem:[#allocation2 + $0x25]]
    %s62 = sld [smem:[#allocation2 + $0x26]]
    %s63 = sld [smem:[#allocation2 + $0x27]]
    %s64 = sld [smem:[#allocation2 + $0x28]]
    %s65 = sld [smem:[#allocation2 + $0x29]]
    %s66 = sld [smem:[#allocation2 + $0x2a]]
    %s67 = sld [smem:[#allocation2 + $0x2b]]
    %s68 = sld [smem:[#allocation2 + $0x2c]]
    %s69 = sld [smem:[#allocation2 + $0x2d]]
    %s70 = sld [smem:[#allocation2 + $0x2e]]
    %s71 = sld [smem:[#allocation2 + $0x2f]]
    %s72 = sld [smem:[#allocation2 + $0x30]]
    %s73 = sld [smem:[#allocation2 + $0x31]]
    %s74 = sld [smem:[#allocation2 + $0x32]]
    %s75 = sld [smem:[#allocation2 + $0x33]]
    %s76 = sld [smem:[#allocation2 + $0x34]]
    %s77 = sld [smem:[#allocation2 + $0x35]]
    %s78 = sld [smem:[#allocation2 + $0x36]]
    %s79 = sld [smem:[#allocation2 + $0x37]]
    %s80 = sld [smem:[#allocation2 + $0x38]]
    %s81 = sld [smem:[#allocation2 + $0x39]]
    %s82 = sld [smem:[#allocation2 + $0x3a]]
    %s83 = sld [smem:[#allocation2 + $0x3b]]
    %s84 = sld [smem:[#allocation2 + $0x3c]]
    %s85 = sld [smem:[#allocation2 + $0x3d]]
    %s86 = sld [smem:[#allocation2 + $0x3e]]
    %s87 = sld [smem:[#allocation2 + $0x3f]]
    %s88 = sld [smem:[#allocation2 + $0x40]]
    %s89 = sld [smem:[#allocation2 + $0x41]]
    %s90 = sld [smem:[#allocation2 + $0x42]]
    %s91 = sld [smem:[#allocation2 + $0x43]]
    %s92 = sld [smem:[#allocation2 + $0x44]]
    %s93 = sld [smem:[#allocation2 + $0x45]]
    %s94 = sld [smem:[#allocation2 + $0x46]]
    %s95 = sld [smem:[#allocation2 + $0x47]]
    %s96 = sld [smem:[#allocation2 + $0x48]]
    %s97 = sld [smem:[#allocation2 + $0x49]]
    %s98 = sld [smem:[#allocation2 + $0x4a]]
    %s99 = sld [smem:[#allocation2 + $0x4b]]
    %s100 = sld [smem:[#allocation2 + $0x4c]]
    %s101 = sld [smem:[#allocation2 + $0x4d]]
    %s102 = sld [smem:[#allocation2 + $0x4e]]
    %s103 = sld [smem:[#allocation2 + $0x4f]]
    %s104 = sld [smem:[#allocation2 + $0x50]]
    %s105 = sld [smem:[#allocation2 + $0x51]]
    %s106 = sld [smem:[#allocation2 + $0x52]]
    %s107 = sld [smem:[#allocation2 + $0x53]]
    %s108 = sld [smem:[#allocation2 + $0x54]]
    %s109 = sld [smem:[#allocation2 + $0x55]]
    %s110 = sld [smem:[#allocation2 + $0x56]]
    %s111 = sld [smem:[#allocation2 + $0x57]]
    %s112 = sld [smem:[#allocation2 + $0x58]]
    %s113 = sld [smem:[#allocation2 + $0x59]]
    %s114 = sld [smem:[#allocation2 + $0x5a]]
    %s115 = sld [smem:[#allocation2 + $0x5b]]
    %s116 = sld [smem:[#allocation2 + $0x5c]]
    %s117 = sld [smem:[#allocation2 + $0x5d]]
    %s118 = sld [smem:[#allocation2 + $0x5e]]
    %s119 = sld [smem:[#allocation2 + $0x5f]]
    %s120 = sld [smem:[#allocation2 + $0x60]]
    %s121 = sld [smem:[#allocation2 + $0x61]]
    %s122 = sld [smem:[#allocation2 + $0x62]]
    %s123 = sld [smem:[#allocation2 + $0x63]]
    %s124 = sld [smem:[#allocation2 + $0x64]]
    %s125 = sld [smem:[#allocation2 + $0x65]]
    %s126 = sld [smem:[#allocation2 + $0x66]]
    %s127 = sld [smem:[#allocation2 + $0x67]]
    %s128 = sld [smem:[#allocation2 + $0x68]]
    %s129 = sld [smem:[#allocation2 + $0x69]]
    %s130 = sld [smem:[#allocation2 + $0x6a]]
    %s131 = sld [smem:[#allocation2 + $0x6b]]
    %s132 = sld [smem:[#allocation2 + $0x6c]]
    %s133 = sld [smem:[#allocation2 + $0x6d]]
    %s134 = sld [smem:[#allocation2 + $0x6e]]
    %s135 = sld [smem:[#allocation2 + $0x6f]]
    %s136 = sld [smem:[#allocation2 + $0x70]]
    %s137 = sld [smem:[#allocation2 + $0x71]]
    %s138 = sld [smem:[#allocation2 + $0x72]]
    %s139 = sld [smem:[#allocation2 + $0x73]]
    %s140 = sld [smem:[#allocation2 + $0x74]]
    %s141 = sld [smem:[#allocation2 + $0x75]]
    %s142 = sld [smem:[#allocation2 + $0x76]]
    %s143 = sld [smem:[#allocation2 + $0x77]]
    %s144 = sld [smem:[#allocation2 + $0x78]]
    %s145 = sld [smem:[#allocation2 + $0x79]]
    %s146 = sld [smem:[#allocation2 + $0x7a]]
    %s147 = sld [smem:[#allocation2 + $0x7b]]
    %s148 = sld [smem:[#allocation2 + $0x7c]]
    %s149 = sld [smem:[#allocation2 + $0x7d]]
    %s150 = sld [smem:[#allocation2 + $0x7e]]
    %s151 = sld [smem:[#allocation2 + $0x7f]]
    %s152 = sld [smem:[#allocation2 + $0x80]]
    %s153 = sld [smem:[#allocation2 + $0x81]]
    %s154 = sld [smem:[#allocation2 + $0x82]]
    %s155 = sld [smem:[#allocation2 + $0x83]]
    %s156 = sld [smem:[#allocation2 + $0x84]]
    %s157 = sld [smem:[#allocation2 + $0x85]]
    %s158 = sld [smem:[#allocation2 + $0x86]]
    %s159 = sld [smem:[#allocation2 + $0x87]]
    %s160 = sld [smem:[#allocation2 + $0x88]]
    %s161 = sld [smem:[#allocation2 + $0x89]]
    %s162 = sld [smem:[#allocation2 + $0x8a]]
    %s163 = sld [smem:[#allocation2 + $0x8b]]
    %s164 = sld [smem:[#allocation2 + $0x8c]]
    %s165 = sld [smem:[#allocation2 + $0x8d]]
    %s166 = sld [smem:[#allocation2 + $0x8e]]
    %s167 = sld [smem:[#allocation2 + $0x8f]]
    %s168 = sld [smem:[#allocation2 + $0x90]]
    %s169 = sld [smem:[#allocation2 + $0x91]]
    %s170 = sld [smem:[#allocation2 + $0x92]]
    %s171 = sld [smem:[#allocation2 + $0x93]]
    %s172 = sld [smem:[#allocation2 + $0x94]]
    %s173 = sld [smem:[#allocation2 + $0x95]]
    %s174 = sld [smem:[#allocation2 + $0x96]]
    %s175 = sld [smem:[#allocation2 + $0x97]]
    %s176 = sld [smem:[#allocation2 + $0x98]]
    %s177 = sld [smem:[#allocation2 + $0x99]]
    %s178 = sld [smem:[#allocation2 + $0x9a]]
    %s179 = sld [smem:[#allocation2 + $0x9b]]
    %s180 = sld [smem:[#allocation2 + $0x9c]]
    %s181 = sld [smem:[#allocation2 + $0x9d]]
    %s182 = sld [smem:[#allocation2 + $0x9e]]
    %s183 = sld [smem:[#allocation2 + $0x9f]]
    %s184 = sld [smem:[#allocation2 + $0xa0]]
    %s185 = sld [smem:[#allocation2 + $0xa1]]
    %s186 = sld [smem:[#allocation2 + $0xa2]]
    %s187 = sld [smem:[#allocation2 + $0xa3]]
    %s188 = sld [smem:[#allocation2 + $0xa4]]
    %s189 = sld [smem:[#allocation2 + $0xa5]]
    %s190 = sld [smem:[#allocation2 + $0xa6]]
    %s191 = sld [smem:[#allocation2 + $0xa7]]
    %s192 = sld [smem:[#allocation2 + $0xa8]]
    %s193 = sld [smem:[#allocation2 + $0xa9]]
    %s194 = sld [smem:[#allocation2 + $0xaa]]
    %s195 = sld [smem:[#allocation2 + $0xab]]
    %s196 = sld [smem:[#allocation2 + $0xac]]
    %s197 = sld [smem:[#allocation2 + $0xad]]
    %s198 = sld [smem:[#allocation2 + $0xae]]
    %s199 = sld [smem:[#allocation2 + $0xaf]]
    %s200 = sld [smem:[#allocation2 + $0xb0]]
    %s201 = sld [smem:[#allocation2 + $0xb1]]
    %s202 = sld [smem:[#allocation2 + $0xb2]]
    %s203 = sld [smem:[#allocation2 + $0xb3]]
    %s204 = sld [smem:[#allocation2 + $0xb4]]
    %s205 = sld [smem:[#allocation2 + $0xb5]]
    %s206 = sld [smem:[#allocation2 + $0xb6]]
    %s207 = sld [smem:[#allocation2 + $0xb7]]
    %s208 = sld [smem:[#allocation2 + $0xb8]]
    %s209 = sld [smem:[#allocation2 + $0xb9]]
    %s210 = sld [smem:[#allocation2 + $0xba]]
    %s211 = sld [smem:[#allocation2 + $0xbb]]
    %s212 = sld [smem:[#allocation2 + $0xbc]]
    %s213 = sld [smem:[#allocation2 + $0xbd]]
    %s214 = sld [smem:[#allocation2 + $0xbe]]
    %s215 = sld [smem:[#allocation2 + $0xbf]]
    %s216 = sld [smem:[#allocation2 + $0xc0]]
    %v217 = vld [vmem:[%s1] sm:$0xff]
    %v218 = vld [vmem:[%s1 + $0x8] sm:$0xff]
    %s219 = sadd.s32 0, 16
    %s220 = scalar_lea.vmem %s1, %s219
    %v221 = vld [vmem:[%s220] sm:$0xff]
    %v222 = vld [vmem:[%s220 + $0x8] sm:$0xff]
    %v223 = vstv %s24
    %v224 = vmul.f32 %v217, %v223
    %v225 = vmul.f32 %v218, %v223
    %v226 = vstv %s40
    %v227 = vmul.f32 %v221, %v226
    %v228 = vmul.f32 %v222, %v226
    %v229 = vadd.f32 %v224, %v227
    %v230 = vadd.f32 %v225, %v228
    %v231 = vstv %s56
    %v232 = vadd.f32 %v229, %v231
    %v233 = vadd.f32 %v230, %v231
    %v234 = vmax.f32 %v232, 0.0
    %v235 = vmax.f32 %v233, 0.0
    %v236 = vstv %s72
    %v237 = vmul.f32 %v234, %v236
    %v238 = vmul.f32 %v235, %v236
    %v239 = vstv %s200
    %v240 = vadd.f32 %v239, %v237
    %v241 = vadd.f32 %v239, %v238
    %v242 = vstv %s73
    %v243 = vmul.f32 %v234, %v242
    %v244 = vmul.f32 %v235, %v242
    %v245 = vstv %s201
    %v246 = vadd.f32 %v245, %v243
    %v247 = vadd.f32 %v245, %v244
    %v248 = vstv %s74
    %v249 = vmul.f32 %v234, %v248
    %v250 = vmul.f32 %v235, %v248
    %v251 = vstv %s202
    %v252 = vadd.f32 %v251, %v249
    %v253 = vadd.f32 %v251, %v250
    %v254 = vstv %s75
    %v255 = vmul.f32 %v234, %v254
    %v256 = vmul.f32 %v235, %v254
    %v257 = vstv %s203
    %v258 = vadd.f32 %v257, %v255
    %v259 = vadd.f32 %v257, %v256
    %v260 = vstv %s76
    %v261 = vmul.f32 %v234, %v260
    %v262 = vmul.f32 %v235, %v260
    %v263 = vstv %s204
    %v264 = vadd.f32 %v263, %v261
    %v265 = vadd.f32 %v263, %v262
    %v266 = vstv %s77
    %v267 = vmul.f32 %v234, %v266
    %v268 = vmul.f32 %v235, %v266
    %v269 = vstv %s205
    %v270 = vadd.f32 %v269, %v267
    %v271 = vadd.f32 %v269, %v268
    %v272 = vstv %s78
    %v273 = vmul.f32 %v234, %v272
    %v274 = vmul.f32 %v235, %v272
    %v275 = vstv %s206
    %v276 = vadd.f32 %v275, %v273
    %v277 = vadd.f32 %v275, %v274
    %v278 = vstv %s79
    %v279 = vmul.f32 %v234, %v278
    %v280 = vmul.f32 %v235, %v278
    %v281 = vstv %s207
    %v282 = vadd.f32 %v281, %v279
    %v283 = vadd.f32 %v281, %v280
    %v284 = vstv %s25
    %v285 = vmul.f32 %v217, %v284
    %v286 = vmul.f32 %v218, %v284
    %v287 = vstv %s41
    %v288 = vmul.f32 %v221, %v287
    %v289 = vmul.f32 %v222, %v287
    %v290 = vadd.f32 %v285, %v288
    %v291 = vadd.f32 %v286, %v289
    %v292 = vstv %s57
    %v293 = vadd.f32 %v290, %v292
    %v294 = vadd.f32 %v291, %v292
    %v295 = vmax.f32 %v293, 0.0
    %v296 = vmax.f32 %v294, 0.0
    %v297 = vstv %s80
    %v298 = vmul.f32 %v295, %v297
    %v299 = vmul.f32 %v296, %v297
    %v300 = vadd.f32 %v240, %v298
    %v301 = vadd.f32 %v241, %v299
    %v302 = vstv %s81
    %v303 = vmul.f32 %v295, %v302
    %v304 = vmul.f32 %v296, %v302
    %v305 = vadd.f32 %v246, %v303
    %v306 = vadd.f32 %v247, %v304
    %v307 = vstv %s82
    %v308 = vmul.f32 %v295, %v307
    %v309 = vmul.f32 %v296, %v307
    %v310 = vadd.f32 %v252, %v308
    %v311 = vadd.f32 %v253, %v309
    %v312 = vstv %s83
    %v313 = vmul.f32 %v295, %v312
    %v314 = vmul.f32 %v296, %v312
    %v315 = vadd.f32 %v258, %v313
    %v316 = vadd.f32 %v259, %v314
    %v317 = vstv %s84
    %v318 = vmul.f32 %v295, %v317
    %v319 = vmul.f32 %v296, %v317
    %v320 = vadd.f32 %v264, %v318
    %v321 = vadd.f32 %v265, %v319
    %v322 = vstv %s85
    %v323 = vmul.f32 %v295, %v322
    %v324 = vmul.f32 %v296, %v322
    %v325 = vadd.f32 %v270, %v323
    %v326 = vadd.f32 %v271, %v324
    %v327 = vstv %s86
    %v328 = vmul.f32 %v295, %v327
    %v329 = vmul.f32 %v296, %v327
    %v330 = vadd.f32 %v276, %v328
    %v331 = vadd.f32 %v277, %v329
    %v332 = vstv %s87
    %v333 = vmul.f32 %v295, %v332
    %v334 = vmul.f32 %v296, %v332
    %v335 = vadd.f32 %v282, %v333
    %v336 = vadd.f32 %v283, %v334
    %v337 = vstv %s26
    %v338 = vmul.f32 %v217, %v337
    %v339 = vmul.f32 %v218, %v337
    %v340 = vstv %s42
    %v341 = vmul.f32 %v221, %v340
    %v342 = vmul.f32 %v222, %v340
    %v343 = vadd.f32 %v338, %v341
    %v344 = vadd.f32 %v339, %v342
    %v345 = vstv %s58
    %v346 = vadd.f32 %v343, %v345
    %v347 = vadd.f32 %v344, %v345
    %v348 = vmax.f32 %v346, 0.0
    %v349 = vmax.f32 %v347, 0.0
    %v350 = vstv %s88
    %v351 = vmul.f32 %v348, %v350
    %v352 = vmul.f32 %v349, %v350
    %v353 = vadd.f32 %v300, %v351
    %v354 = vadd.f32 %v301, %v352
    %v355 = vstv %s89
    %v356 = vmul.f32 %v348, %v355
    %v357 = vmul.f32 %v349, %v355
    %v358 = vadd.f32 %v305, %v356
    %v359 = vadd.f32 %v306, %v357
    %v360 = vstv %s90
    %v361 = vmul.f32 %v348, %v360
    %v362 = vmul.f32 %v349, %v360
    %v363 = vadd.f32 %v310, %v361
    %v364 = vadd.f32 %v311, %v362
    %v365 = vstv %s91
    %v366 = vmul.f32 %v348, %v365
    %v367 = vmul.f32 %v349, %v365
    %v368 = vadd.f32 %v315, %v366
    %v369 = vadd.f32 %v316, %v367
    %v370 = vstv %s92
    %v371 = vmul.f32 %v348, %v370
    %v372 = vmul.f32 %v349, %v370
    %v373 = vadd.f32 %v320, %v371
    %v374 = vadd.f32 %v321, %v372
    %v375 = vstv %s93
    %v376 = vmul.f32 %v348, %v375
    %v377 = vmul.f32 %v349, %v375
    %v378 = vadd.f32 %v325, %v376
    %v379 = vadd.f32 %v326, %v377
    %v380 = vstv %s94
    %v381 = vmul.f32 %v348, %v380
    %v382 = vmul.f32 %v349, %v380
    %v383 = vadd.f32 %v330, %v381
    %v384 = vadd.f32 %v331, %v382
    %v385 = vstv %s95
    %v386 = vmul.f32 %v348, %v385
    %v387 = vmul.f32 %v349, %v385
    %v388 = vadd.f32 %v335, %v386
    %v389 = vadd.f32 %v336, %v387
    %v390 = vstv %s27
    %v391 = vmul.f32 %v217, %v390
    %v392 = vmul.f32 %v218, %v390
    %v393 = vstv %s43
    %v394 = vmul.f32 %v221, %v393
    %v395 = vmul.f32 %v222, %v393
    %v396 = vadd.f32 %v391, %v394
    %v397 = vadd.f32 %v392, %v395
    %v398 = vstv %s59
    %v399 = vadd.f32 %v396, %v398
    %v400 = vadd.f32 %v397, %v398
    %v401 = vmax.f32 %v399, 0.0
    %v402 = vmax.f32 %v400, 0.0
    %v403 = vstv %s96
    %v404 = vmul.f32 %v401, %v403
    %v405 = vmul.f32 %v402, %v403
    %v406 = vadd.f32 %v353, %v404
    %v407 = vadd.f32 %v354, %v405
    %v408 = vstv %s97
    %v409 = vmul.f32 %v401, %v408
    %v410 = vmul.f32 %v402, %v408
    %v411 = vadd.f32 %v358, %v409
    %v412 = vadd.f32 %v359, %v410
    %v413 = vstv %s98
    %v414 = vmul.f32 %v401, %v413
    %v415 = vmul.f32 %v402, %v413
    %v416 = vadd.f32 %v363, %v414
    %v417 = vadd.f32 %v364, %v415
    %v418 = vstv %s99
    %v419 = vmul.f32 %v401, %v418
    %v420 = vmul.f32 %v402, %v418
    %v421 = vadd.f32 %v368, %v419
    %v422 = vadd.f32 %v369, %v420
    %v423 = vstv %s100
    %v424 = vmul.f32 %v401, %v423
    %v425 = vmul.f32 %v402, %v423
    %v426 = vadd.f32 %v373, %v424
    %v427 = vadd.f32 %v374, %v425
    %v428 = vstv %s101
    %v429 = vmul.f32 %v401, %v428
    %v430 = vmul.f32 %v402, %v428
    %v431 = vadd.f32 %v378, %v429
    %v432 = vadd.f32 %v379, %v430
    %v433 = vstv %s102
    %v434 = vmul.f32 %v401, %v433
    %v435 = vmul.f32 %v402, %v433
    %v436 = vadd.f32 %v383, %v434
    %v437 = vadd.f32 %v384, %v435
    %v438 = vstv %s103
    %v439 = vmul.f32 %v401, %v438
    %v440 = vmul.f32 %v402, %v438
    %v441 = vadd.f32 %v388, %v439
    %v442 = vadd.f32 %v389, %v440
    %v443 = vstv %s28
    %v444 = vmul.f32 %v217, %v443
    %v445 = vmul.f32 %v218, %v443
    %v446 = vstv %s44
    %v447 = vmul.f32 %v221, %v446
    %v448 = vmul.f32 %v222, %v446
    %v449 = vadd.f32 %v444, %v447
    %v450 = vadd.f32 %v445, %v448
    %v451 = vstv %s60
    %v452 = vadd.f32 %v449, %v451
    %v453 = vadd.f32 %v450, %v451
    %v454 = vmax.f32 %v452, 0.0
    %v455 = vmax.f32 %v453, 0.0
    %v456 = vstv %s104
    %v457 = vmul.f32 %v454, %v456
    %v458 = vmul.f32 %v455, %v456
    %v459 = vadd.f32 %v406, %v457
    %v460 = vadd.f32 %v407, %v458
    %v461 = vstv %s105
    %v462 = vmul.f32 %v454, %v461
    %v463 = vmul.f32 %v455, %v461
    %v464 = vadd.f32 %v411, %v462
    %v465 = vadd.f32 %v412, %v463
    %v466 = vstv %s106
    %v467 = vmul.f32 %v454, %v466
    %v468 = vmul.f32 %v455, %v466
    %v469 = vadd.f32 %v416, %v467
    %v470 = vadd.f32 %v417, %v468
    %v471 = vstv %s107
    %v472 = vmul.f32 %v454, %v471
    %v473 = vmul.f32 %v455, %v471
    %v474 = vadd.f32 %v421, %v472
    %v475 = vadd.f32 %v422, %v473
    %v476 = vstv %s108
    %v477 = vmul.f32 %v454, %v476
    %v478 = vmul.f32 %v455, %v476
    %v479 = vadd.f32 %v426, %v477
    %v480 = vadd.f32 %v427, %v478
    %v481 = vstv %s109
    %v482 = vmul.f32 %v454, %v481
    %v483 = vmul.f32 %v455, %v481
    %v484 = vadd.f32 %v431, %v482
    %v485 = vadd.f32 %v432, %v483
    %v486 = vstv %s110
    %v487 = vmul.f32 %v454, %v486
    %v488 = vmul.f32 %v455, %v486
    %v489 = vadd.f32 %v436, %v487
    %v490 = vadd.f32 %v437, %v488
    %v491 = vstv %s111
    %v492 = vmul.f32 %v454, %v491
    %v493 = vmul.f32 %v455, %v491
    %v494 = vadd.f32 %v441, %v492
    %v495 = vadd.f32 %v442, %v493
    %v496 = vstv %s29
    %v497 = vmul.f32 %v217, %v496
    %v498 = vmul.f32 %v218, %v496
    %v499 = vstv %s45
    %v500 = vmul.f32 %v221, %v499
    %v501 = vmul.f32 %v222, %v499
    %v502 = vadd.f32 %v497, %v500
    %v503 = vadd.f32 %v498, %v501
    %v504 = vstv %s61
    %v505 = vadd.f32 %v502, %v504
    %v506 = vadd.f32 %v503, %v504
    %v507 = vmax.f32 %v505, 0.0
    %v508 = vmax.f32 %v506, 0.0
    %v509 = vstv %s112
    %v510 = vmul.f32 %v507, %v509
    %v511 = vmul.f32 %v508, %v509
    %v512 = vadd.f32 %v459, %v510
    %v513 = vadd.f32 %v460, %v511
    %v514 = vstv %s113
    %v515 = vmul.f32 %v507, %v514
    %v516 = vmul.f32 %v508, %v514
    %v517 = vadd.f32 %v464, %v515
    %v518 = vadd.f32 %v465, %v516
    %v519 = vstv %s114
    %v520 = vmul.f32 %v507, %v519
    %v521 = vmul.f32 %v508, %v519
    %v522 = vadd.f32 %v469, %v520
    %v523 = vadd.f32 %v470, %v521
    %v524 = vstv %s115
    %v525 = vmul.f32 %v507, %v524
    %v526 = vmul.f32 %v508, %v524
    %v527 = vadd.f32 %v474, %v525
    %v528 = vadd.f32 %v475, %v526
    %v529 = vstv %s116
    %v530 = vmul.f32 %v507, %v529
    %v531 = vmul.f32 %v508, %v529
    %v532 = vadd.f32 %v479, %v530
    %v533 = vadd.f32 %v480, %v531
    %v534 = vstv %s117
    %v535 = vmul.f32 %v507, %v534
    %v536 = vmul.f32 %v508, %v534
    %v537 = vadd.f32 %v484, %v535
    %v538 = vadd.f32 %v485, %v536
    %v539 = vstv %s118
    %v540 = vmul.f32 %v507, %v539
    %v541 = vmul.f32 %v508, %v539
    %v542 = vadd.f32 %v489, %v540
    %v543 = vadd.f32 %v490, %v541
    %v544 = vstv %s119
    %v545 = vmul.f32 %v507, %v544
    %v546 = vmul.f32 %v508, %v544
    %v547 = vadd.f32 %v494, %v545
    %v548 = vadd.f32 %v495, %v546
    %v549 = vstv %s30
    %v550 = vmul.f32 %v217, %v549
    %v551 = vmul.f32 %v218, %v549
    %v552 = vstv %s46
    %v553 = vmul.f32 %v221, %v552
    %v554 = vmul.f32 %v222, %v552
    %v555 = vadd.f32 %v550, %v553
    %v556 = vadd.f32 %v551, %v554
    %v557 = vstv %s62
    %v558 = vadd.f32 %v555, %v557
    %v559 = vadd.f32 %v556, %v557
    %v560 = vmax.f32 %v558, 0.0
    %v561 = vmax.f32 %v559, 0.0
    %v562 = vstv %s120
    %v563 = vmul.f32 %v560, %v562
    %v564 = vmul.f32 %v561, %v562
    %v565 = vadd.f32 %v512, %v563
    %v566 = vadd.f32 %v513, %v564
    %v567 = vstv %s121
    %v568 = vmul.f32 %v560, %v567
    %v569 = vmul.f32 %v561, %v567
    %v570 = vadd.f32 %v517, %v568
    %v571 = vadd.f32 %v518, %v569
    %v572 = vstv %s122
    %v573 = vmul.f32 %v560, %v572
    %v574 = vmul.f32 %v561, %v572
    %v575 = vadd.f32 %v522, %v573
    %v576 = vadd.f32 %v523, %v574
    %v577 = vstv %s123
    %v578 = vmul.f32 %v560, %v577
    %v579 = vmul.f32 %v561, %v577
    %v580 = vadd.f32 %v527, %v578
    %v581 = vadd.f32 %v528, %v579
    %v582 = vstv %s124
    %v583 = vmul.f32 %v560, %v582
    %v584 = vmul.f32 %v561, %v582
    %v585 = vadd.f32 %v532, %v583
    %v586 = vadd.f32 %v533, %v584
    %v587 = vstv %s125
    %v588 = vmul.f32 %v560, %v587
    %v589 = vmul.f32 %v561, %v587
    %v590 = vadd.f32 %v537, %v588
    %v591 = vadd.f32 %v538, %v589
    %v592 = vstv %s126
    %v593 = vmul.f32 %v560, %v592
    %v594 = vmul.f32 %v561, %v592
    %v595 = vadd.f32 %v542, %v593
    %v596 = vadd.f32 %v543, %v594
    %v597 = vstv %s127
    %v598 = vmul.f32 %v560, %v597
    %v599 = vmul.f32 %v561, %v597
    %v600 = vadd.f32 %v547, %v598
    %v601 = vadd.f32 %v548, %v599
    %v602 = vstv %s31
    %v603 = vmul.f32 %v217, %v602
    %v604 = vmul.f32 %v218, %v602
    %v605 = vstv %s47
    %v606 = vmul.f32 %v221, %v605
    %v607 = vmul.f32 %v222, %v605
    %v608 = vadd.f32 %v603, %v606
    %v609 = vadd.f32 %v604, %v607
    %v610 = vstv %s63
    %v611 = vadd.f32 %v608, %v610
    %v612 = vadd.f32 %v609, %v610
    %v613 = vmax.f32 %v611, 0.0
    %v614 = vmax.f32 %v612, 0.0
    %v615 = vstv %s128
    %v616 = vmul.f32 %v613, %v615
    %v617 = vmul.f32 %v614, %v615
    %v618 = vadd.f32 %v565, %v616
    %v619 = vadd.f32 %v566, %v617
    %v620 = vstv %s129
    %v621 = vmul.f32 %v613, %v620
    %v622 = vmul.f32 %v614, %v620
    %v623 = vadd.f32 %v570, %v621
    %v624 = vadd.f32 %v571, %v622
    %v625 = vstv %s130
    %v626 = vmul.f32 %v613, %v625
    %v627 = vmul.f32 %v614, %v625
    %v628 = vadd.f32 %v575, %v626
    %v629 = vadd.f32 %v576, %v627
    %v630 = vstv %s131
    %v631 = vmul.f32 %v613, %v630
    %v632 = vmul.f32 %v614, %v630
    %v633 = vadd.f32 %v580, %v631
    %v634 = vadd.f32 %v581, %v632
    %v635 = vstv %s132
    %v636 = vmul.f32 %v613, %v635
    %v637 = vmul.f32 %v614, %v635
    %v638 = vadd.f32 %v585, %v636
    %v639 = vadd.f32 %v586, %v637
    %v640 = vstv %s133
    %v641 = vmul.f32 %v613, %v640
    %v642 = vmul.f32 %v614, %v640
    %v643 = vadd.f32 %v590, %v641
    %v644 = vadd.f32 %v591, %v642
    %v645 = vstv %s134
    %v646 = vmul.f32 %v613, %v645
    %v647 = vmul.f32 %v614, %v645
    %v648 = vadd.f32 %v595, %v646
    %v649 = vadd.f32 %v596, %v647
    %v650 = vstv %s135
    %v651 = vmul.f32 %v613, %v650
    %v652 = vmul.f32 %v614, %v650
    %v653 = vadd.f32 %v600, %v651
    %v654 = vadd.f32 %v601, %v652
    %v655 = vstv %s32
    %v656 = vmul.f32 %v217, %v655
    %v657 = vmul.f32 %v218, %v655
    %v658 = vstv %s48
    %v659 = vmul.f32 %v221, %v658
    %v660 = vmul.f32 %v222, %v658
    %v661 = vadd.f32 %v656, %v659
    %v662 = vadd.f32 %v657, %v660
    %v663 = vstv %s64
    %v664 = vadd.f32 %v661, %v663
    %v665 = vadd.f32 %v662, %v663
    %v666 = vmax.f32 %v664, 0.0
    %v667 = vmax.f32 %v665, 0.0
    %v668 = vstv %s136
    %v669 = vmul.f32 %v666, %v668
    %v670 = vmul.f32 %v667, %v668
    %v671 = vadd.f32 %v618, %v669
    %v672 = vadd.f32 %v619, %v670
    %v673 = vstv %s137
    %v674 = vmul.f32 %v666, %v673
    %v675 = vmul.f32 %v667, %v673
    %v676 = vadd.f32 %v623, %v674
    %v677 = vadd.f32 %v624, %v675
    %v678 = vstv %s138
    %v679 = vmul.f32 %v666, %v678
    %v680 = vmul.f32 %v667, %v678
    %v681 = vadd.f32 %v628, %v679
    %v682 = vadd.f32 %v629, %v680
    %v683 = vstv %s139
    %v684 = vmul.f32 %v666, %v683
    %v685 = vmul.f32 %v667, %v683
    %v686 = vadd.f32 %v633, %v684
    %v687 = vadd.f32 %v634, %v685
    %v688 = vstv %s140
    %v689 = vmul.f32 %v666, %v688
    %v690 = vmul.f32 %v667, %v688
    %v691 = vadd.f32 %v638, %v689
    %v692 = vadd.f32 %v639, %v690
    %v693 = vstv %s141
    %v694 = vmul.f32 %v666, %v693
    %v695 = vmul.f32 %v667, %v693
    %v696 = vadd.f32 %v643, %v694
    %v697 = vadd.f32 %v644, %v695
    %v698 = vstv %s142
    %v699 = vmul.f32 %v666, %v698
    %v700 = vmul.f32 %v667, %v698
    %v701 = vadd.f32 %v648, %v699
    %v702 = vadd.f32 %v649, %v700
    %v703 = vstv %s143
    %v704 = vmul.f32 %v666, %v703
    %v705 = vmul.f32 %v667, %v703
    %v706 = vadd.f32 %v653, %v704
    %v707 = vadd.f32 %v654, %v705
    %v708 = vstv %s33
    %v709 = vmul.f32 %v217, %v708
    %v710 = vmul.f32 %v218, %v708
    %v711 = vstv %s49
    %v712 = vmul.f32 %v221, %v711
    %v713 = vmul.f32 %v222, %v711
    %v714 = vadd.f32 %v709, %v712
    %v715 = vadd.f32 %v710, %v713
    %v716 = vstv %s65
    %v717 = vadd.f32 %v714, %v716
    %v718 = vadd.f32 %v715, %v716
    %v719 = vmax.f32 %v717, 0.0
    %v720 = vmax.f32 %v718, 0.0
    %v721 = vstv %s144
    %v722 = vmul.f32 %v719, %v721
    %v723 = vmul.f32 %v720, %v721
    %v724 = vadd.f32 %v671, %v722
    %v725 = vadd.f32 %v672, %v723
    %v726 = vstv %s145
    %v727 = vmul.f32 %v719, %v726
    %v728 = vmul.f32 %v720, %v726
    %v729 = vadd.f32 %v676, %v727
    %v730 = vadd.f32 %v677, %v728
    %v731 = vstv %s146
    %v732 = vmul.f32 %v719, %v731
    %v733 = vmul.f32 %v720, %v731
    %v734 = vadd.f32 %v681, %v732
    %v735 = vadd.f32 %v682, %v733
    %v736 = vstv %s147
    %v737 = vmul.f32 %v719, %v736
    %v738 = vmul.f32 %v720, %v736
    %v739 = vadd.f32 %v686, %v737
    %v740 = vadd.f32 %v687, %v738
    %v741 = vstv %s148
    %v742 = vmul.f32 %v719, %v741
    %v743 = vmul.f32 %v720, %v741
    %v744 = vadd.f32 %v691, %v742
    %v745 = vadd.f32 %v692, %v743
    %v746 = vstv %s149
    %v747 = vmul.f32 %v719, %v746
    %v748 = vmul.f32 %v720, %v746
    %v749 = vadd.f32 %v696, %v747
    %v750 = vadd.f32 %v697, %v748
    %v751 = vstv %s150
    %v752 = vmul.f32 %v719, %v751
    %v753 = vmul.f32 %v720, %v751
    %v754 = vadd.f32 %v701, %v752
    %v755 = vadd.f32 %v702, %v753
    %v756 = vstv %s151
    %v757 = vmul.f32 %v719, %v756
    %v758 = vmul.f32 %v720, %v756
    %v759 = vadd.f32 %v706, %v757
    %v760 = vadd.f32 %v707, %v758
    %v761 = vstv %s34
    %v762 = vmul.f32 %v217, %v761
    %v763 = vmul.f32 %v218, %v761
    %v764 = vstv %s50
    %v765 = vmul.f32 %v221, %v764
    %v766 = vmul.f32 %v222, %v764
    %v767 = vadd.f32 %v762, %v765
    %v768 = vadd.f32 %v763, %v766
    %v769 = vstv %s66
    %v770 = vadd.f32 %v767, %v769
    %v771 = vadd.f32 %v768, %v769
    %v772 = vmax.f32 %v770, 0.0
    %v773 = vmax.f32 %v771, 0.0
    %v774 = vstv %s152
    %v775 = vmul.f32 %v772, %v774
    %v776 = vmul.f32 %v773, %v774
    %v777 = vadd.f32 %v724, %v775
    %v778 = vadd.f32 %v725, %v776
    %v779 = vstv %s153
    %v780 = vmul.f32 %v772, %v779
    %v781 = vmul.f32 %v773, %v779
    %v782 = vadd.f32 %v729, %v780
    %v783 = vadd.f32 %v730, %v781
    %v784 = vstv %s154
    %v785 = vmul.f32 %v772, %v784
    %v786 = vmul.f32 %v773, %v784
    %v787 = vadd.f32 %v734, %v785
    %v788 = vadd.f32 %v735, %v786
    %v789 = vstv %s155
    %v790 = vmul.f32 %v772, %v789
    %v791 = vmul.f32 %v773, %v789
    %v792 = vadd.f32 %v739, %v790
    %v793 = vadd.f32 %v740, %v791
    %v794 = vstv %s156
    %v795 = vmul.f32 %v772, %v794
    %v796 = vmul.f32 %v773, %v794
    %v797 = vadd.f32 %v744, %v795
    %v798 = vadd.f32 %v745, %v796
    %v799 = vstv %s157
    %v800 = vmul.f32 %v772, %v799
    %v801 = vmul.f32 %v773, %v799
    %v802 = vadd.f32 %v749, %v800
    %v803 = vadd.f32 %v750, %v801
    %v804 = vstv %s158
    %v805 = vmul.f32 %v772, %v804
    %v806 = vmul.f32 %v773, %v804
    %v807 = vadd.f32 %v754, %v805
    %v808 = vadd.f32 %v755, %v806
    %v809 = vstv %s159
    %v810 = vmul.f32 %v772, %v809
    %v811 = vmul.f32 %v773, %v809
    %v812 = vadd.f32 %v759, %v810
    %v813 = vadd.f32 %v760, %v811
    %v814 = vstv %s35
    %v815 = vmul.f32 %v217, %v814
    %v816 = vmul.f32 %v218, %v814
    %v817 = vstv %s51
    %v818 = vmul.f32 %v221, %v817
    %v819 = vmul.f32 %v222, %v817
    %v820 = vadd.f32 %v815, %v818
    %v821 = vadd.f32 %v816, %v819
    %v822 = vstv %s67
    %v823 = vadd.f32 %v820, %v822
    %v824 = vadd.f32 %v821, %v822
    %v825 = vmax.f32 %v823, 0.0
    %v826 = vmax.f32 %v824, 0.0
    %v827 = vstv %s160
    %v828 = vmul.f32 %v825, %v827
    %v829 = vmul.f32 %v826, %v827
    %v830 = vadd.f32 %v777, %v828
    %v831 = vadd.f32 %v778, %v829
    %v832 = vstv %s161
    %v833 = vmul.f32 %v825, %v832
    %v834 = vmul.f32 %v826, %v832
    %v835 = vadd.f32 %v782, %v833
    %v836 = vadd.f32 %v783, %v834
    %v837 = vstv %s162
    %v838 = vmul.f32 %v825, %v837
    %v839 = vmul.f32 %v826, %v837
    %v840 = vadd.f32 %v787, %v838
    %v841 = vadd.f32 %v788, %v839
    %v842 = vstv %s163
    %v843 = vmul.f32 %v825, %v842
    %v844 = vmul.f32 %v826, %v842
    %v845 = vadd.f32 %v792, %v843
    %v846 = vadd.f32 %v793, %v844
    %v847 = vstv %s164
    %v848 = vmul.f32 %v825, %v847
    %v849 = vmul.f32 %v826, %v847
    %v850 = vadd.f32 %v797, %v848
    %v851 = vadd.f32 %v798, %v849
    %v852 = vstv %s165
    %v853 = vmul.f32 %v825, %v852
    %v854 = vmul.f32 %v826, %v852
    %v855 = vadd.f32 %v802, %v853
    %v856 = vadd.f32 %v803, %v854
    %v857 = vstv %s166
    %v858 = vmul.f32 %v825, %v857
    %v859 = vmul.f32 %v826, %v857
    %v860 = vadd.f32 %v807, %v858
    %v861 = vadd.f32 %v808, %v859
    %v862 = vstv %s167
    %v863 = vmul.f32 %v825, %v862
    %v864 = vmul.f32 %v826, %v862
    %v865 = vadd.f32 %v812, %v863
    %v866 = vadd.f32 %v813, %v864
    %v867 = vstv %s36
    %v868 = vmul.f32 %v217, %v867
    %v869 = vmul.f32 %v218, %v867
    %v870 = vstv %s52
    %v871 = vmul.f32 %v221, %v870
    %v872 = vmul.f32 %v222, %v870
    %v873 = vadd.f32 %v868, %v871
    %v874 = vadd.f32 %v869, %v872
    %v875 = vstv %s68
    %v876 = vadd.f32 %v873, %v875
    %v877 = vadd.f32 %v874, %v875
    %v878 = vmax.f32 %v876, 0.0
    %v879 = vmax.f32 %v877, 0.0
    %v880 = vstv %s168
    %v881 = vmul.f32 %v878, %v880
    %v882 = vmul.f32 %v879, %v880
    %v883 = vadd.f32 %v830, %v881
    %v884 = vadd.f32 %v831, %v882
    %v885 = vstv %s169
    %v886 = vmul.f32 %v878, %v885
    %v887 = vmul.f32 %v879, %v885
    %v888 = vadd.f32 %v835, %v886
    %v889 = vadd.f32 %v836, %v887
    %v890 = vstv %s170
    %v891 = vmul.f32 %v878, %v890
    %v892 = vmul.f32 %v879, %v890
    %v893 = vadd.f32 %v840, %v891
    %v894 = vadd.f32 %v841, %v892
    %v895 = vstv %s171
    %v896 = vmul.f32 %v878, %v895
    %v897 = vmul.f32 %v879, %v895
    %v898 = vadd.f32 %v845, %v896
    %v899 = vadd.f32 %v846, %v897
    %v900 = vstv %s172
    %v901 = vmul.f32 %v878, %v900
    %v902 = vmul.f32 %v879, %v900
    %v903 = vadd.f32 %v850, %v901
    %v904 = vadd.f32 %v851, %v902
    %v905 = vstv %s173
    %v906 = vmul.f32 %v878, %v905
    %v907 = vmul.f32 %v879, %v905
    %v908 = vadd.f32 %v855, %v906
    %v909 = vadd.f32 %v856, %v907
    %v910 = vstv %s174
    %v911 = vmul.f32 %v878, %v910
    %v912 = vmul.f32 %v879, %v910
    %v913 = vadd.f32 %v860, %v911
    %v914 = vadd.f32 %v861, %v912
    %v915 = vstv %s175
    %v916 = vmul.f32 %v878, %v915
    %v917 = vmul.f32 %v879, %v915
    %v918 = vadd.f32 %v865, %v916
    %v919 = vadd.f32 %v866, %v917
    %v920 = vstv %s37
    %v921 = vmul.f32 %v217, %v920
    %v922 = vmul.f32 %v218, %v920
    %v923 = vstv %s53
    %v924 = vmul.f32 %v221, %v923
    %v925 = vmul.f32 %v222, %v923
    %v926 = vadd.f32 %v921, %v924
    %v927 = vadd.f32 %v922, %v925
    %v928 = vstv %s69
    %v929 = vadd.f32 %v926, %v928
    %v930 = vadd.f32 %v927, %v928
    %v931 = vmax.f32 %v929, 0.0
    %v932 = vmax.f32 %v930, 0.0
    %v933 = vstv %s176
    %v934 = vmul.f32 %v931, %v933
    %v935 = vmul.f32 %v932, %v933
    %v936 = vadd.f32 %v883, %v934
    %v937 = vadd.f32 %v884, %v935
    %v938 = vstv %s177
    %v939 = vmul.f32 %v931, %v938
    %v940 = vmul.f32 %v932, %v938
    %v941 = vadd.f32 %v888, %v939
    %v942 = vadd.f32 %v889, %v940
    %v943 = vstv %s178
    %v944 = vmul.f32 %v931, %v943
    %v945 = vmul.f32 %v932, %v943
    %v946 = vadd.f32 %v893, %v944
    %v947 = vadd.f32 %v894, %v945
    %v948 = vstv %s179
    %v949 = vmul.f32 %v931, %v948
    %v950 = vmul.f32 %v932, %v948
    %v951 = vadd.f32 %v898, %v949
    %v952 = vadd.f32 %v899, %v950
    %v953 = vstv %s180
    %v954 = vmul.f32 %v931, %v953
    %v955 = vmul.f32 %v932, %v953
    %v956 = vadd.f32 %v903, %v954
    %v957 = vadd.f32 %v904, %v955
    %v958 = vstv %s181
    %v959 = vmul.f32 %v931, %v958
    %v960 = vmul.f32 %v932, %v958
    %v961 = vadd.f32 %v908, %v959
    %v962 = vadd.f32 %v909, %v960
    %v963 = vstv %s182
    %v964 = vmul.f32 %v931, %v963
    %v965 = vmul.f32 %v932, %v963
    %v966 = vadd.f32 %v913, %v964
    %v967 = vadd.f32 %v914, %v965
    %v968 = vstv %s183
    %v969 = vmul.f32 %v931, %v968
    %v970 = vmul.f32 %v932, %v968
    %v971 = vadd.f32 %v918, %v969
    %v972 = vadd.f32 %v919, %v970
    %v973 = vstv %s38
    %v974 = vmul.f32 %v217, %v973
    %v975 = vmul.f32 %v218, %v973
    %v976 = vstv %s54
    %v977 = vmul.f32 %v221, %v976
    %v978 = vmul.f32 %v222, %v976
    %v979 = vadd.f32 %v974, %v977
    %v980 = vadd.f32 %v975, %v978
    %v981 = vstv %s70
    %v982 = vadd.f32 %v979, %v981
    %v983 = vadd.f32 %v980, %v981
    %v984 = vmax.f32 %v982, 0.0
    %v985 = vmax.f32 %v983, 0.0
    %v986 = vstv %s184
    %v987 = vmul.f32 %v984, %v986
    %v988 = vmul.f32 %v985, %v986
    %v989 = vadd.f32 %v936, %v987
    %v990 = vadd.f32 %v937, %v988
    %v991 = vstv %s185
    %v992 = vmul.f32 %v984, %v991
    %v993 = vmul.f32 %v985, %v991
    %v994 = vadd.f32 %v941, %v992
    %v995 = vadd.f32 %v942, %v993
    %v996 = vstv %s186
    %v997 = vmul.f32 %v984, %v996
    %v998 = vmul.f32 %v985, %v996
    %v999 = vadd.f32 %v946, %v997
    %v1000 = vadd.f32 %v947, %v998
    %v1001 = vstv %s187
    %v1002 = vmul.f32 %v984, %v1001
    %v1003 = vmul.f32 %v985, %v1001
    %v1004 = vadd.f32 %v951, %v1002
    %v1005 = vadd.f32 %v952, %v1003
    %v1006 = vstv %s188
    %v1007 = vmul.f32 %v984, %v1006
    %v1008 = vmul.f32 %v985, %v1006
    %v1009 = vadd.f32 %v956, %v1007
    %v1010 = vadd.f32 %v957, %v1008
    %v1011 = vstv %s189
    %v1012 = vmul.f32 %v984, %v1011
    %v1013 = vmul.f32 %v985, %v1011
    %v1014 = vadd.f32 %v961, %v1012
    %v1015 = vadd.f32 %v962, %v1013
    %v1016 = vstv %s190
    %v1017 = vmul.f32 %v984, %v1016
    %v1018 = vmul.f32 %v985, %v1016
    %v1019 = vadd.f32 %v966, %v1017
    %v1020 = vadd.f32 %v967, %v1018
    %v1021 = vstv %s191
    %v1022 = vmul.f32 %v984, %v1021
    %v1023 = vmul.f32 %v985, %v1021
    %v1024 = vadd.f32 %v971, %v1022
    %v1025 = vadd.f32 %v972, %v1023
    %v1026 = vstv %s39
    %v1027 = vmul.f32 %v217, %v1026
    %v1028 = vmul.f32 %v218, %v1026
    %v1029 = vstv %s55
    %v1030 = vmul.f32 %v221, %v1029
    %v1031 = vmul.f32 %v222, %v1029
    %v1032 = vadd.f32 %v1027, %v1030
    %v1033 = vadd.f32 %v1028, %v1031
    %v1034 = vstv %s71
    %v1035 = vadd.f32 %v1032, %v1034
    %v1036 = vadd.f32 %v1033, %v1034
    %v1037 = vmax.f32 %v1035, 0.0
    %v1038 = vmax.f32 %v1036, 0.0
    %v1039 = vstv %s192
    %v1040 = vmul.f32 %v1037, %v1039
    %v1041 = vmul.f32 %v1038, %v1039
    %v1042 = vadd.f32 %v989, %v1040
    %v1043 = vadd.f32 %v990, %v1041
    %v1044 = vstv %s193
    %v1045 = vmul.f32 %v1037, %v1044
    %v1046 = vmul.f32 %v1038, %v1044
    %v1047 = vadd.f32 %v994, %v1045
    %v1048 = vadd.f32 %v995, %v1046
    %v1049 = vstv %s194
    %v1050 = vmul.f32 %v1037, %v1049
    %v1051 = vmul.f32 %v1038, %v1049
    %v1052 = vadd.f32 %v999, %v1050
    %v1053 = vadd.f32 %v1000, %v1051
    %v1054 = vstv %s195
    %v1055 = vmul.f32 %v1037, %v1054
    %v1056 = vmul.f32 %v1038, %v1054
    %v1057 = vadd.f32 %v1004, %v1055
    %v1058 = vadd.f32 %v1005, %v1056
    %v1059 = vstv %s196
    %v1060 = vmul.f32 %v1037, %v1059
    %v1061 = vmul.f32 %v1038, %v1059
    %v1062 = vadd.f32 %v1009, %v1060
    %v1063 = vadd.f32 %v1010, %v1061
    %v1064 = vstv %s197
    %v1065 = vmul.f32 %v1037, %v1064
    %v1066 = vmul.f32 %v1038, %v1064
    %v1067 = vadd.f32 %v1014, %v1065
    %v1068 = vadd.f32 %v1015, %v1066
    %v1069 = vstv %s198
    %v1070 = vmul.f32 %v1037, %v1069
    %v1071 = vmul.f32 %v1038, %v1069
    %v1072 = vadd.f32 %v1019, %v1070
    %v1073 = vadd.f32 %v1020, %v1071
    %v1074 = vstv %s199
    %v1075 = vmul.f32 %v1037, %v1074
    %v1076 = vmul.f32 %v1038, %v1074
    %v1077 = vadd.f32 %v1024, %v1075
    %v1078 = vadd.f32 %v1025, %v1076
    %v1079 = vmax.f32 %v1042, 0.0
    %v1080 = vmax.f32 %v1043, 0.0
    %v1081 = vstv %s208
    %v1082 = vmul.f32 %v1079, %v1081
    %v1083 = vmul.f32 %v1080, %v1081
    %v1084 = vstv %s216
    %v1085 = vadd.f32 %v1084, %v1082
    %v1086 = vadd.f32 %v1084, %v1083
    %v1087 = vmax.f32 %v1047, 0.0
    %v1088 = vmax.f32 %v1048, 0.0
    %v1089 = vstv %s209
    %v1090 = vmul.f32 %v1087, %v1089
    %v1091 = vmul.f32 %v1088, %v1089
    %v1092 = vadd.f32 %v1085, %v1090
    %v1093 = vadd.f32 %v1086, %v1091
    %v1094 = vmax.f32 %v1052, 0.0
    %v1095 = vmax.f32 %v1053, 0.0
    %v1096 = vstv %s210
    %v1097 = vmul.f32 %v1094, %v1096
    %v1098 = vmul.f32 %v1095, %v1096
    %v1099 = vadd.f32 %v1092, %v1097
    %v1100 = vadd.f32 %v1093, %v1098
    %v1101 = vmax.f32 %v1057, 0.0
    %v1102 = vmax.f32 %v1058, 0.0
    %v1103 = vstv %s211
    %v1104 = vmul.f32 %v1101, %v1103
    %v1105 = vmul.f32 %v1102, %v1103
    %v1106 = vadd.f32 %v1099, %v1104
    %v1107 = vadd.f32 %v1100, %v1105
    %v1108 = vmax.f32 %v1062, 0.0
    %v1109 = vmax.f32 %v1063, 0.0
    %v1110 = vstv %s212
    %v1111 = vmul.f32 %v1108, %v1110
    %v1112 = vmul.f32 %v1109, %v1110
    %v1113 = vadd.f32 %v1106, %v1111
    %v1114 = vadd.f32 %v1107, %v1112
    %v1115 = vmax.f32 %v1067, 0.0
    %v1116 = vmax.f32 %v1068, 0.0
    %v1117 = vstv %s213
    %v1118 = vmul.f32 %v1115, %v1117
    %v1119 = vmul.f32 %v1116, %v1117
    %v1120 = vadd.f32 %v1113, %v1118
    %v1121 = vadd.f32 %v1114, %v1119
    %v1122 = vmax.f32 %v1072, 0.0
    %v1123 = vmax.f32 %v1073, 0.0
    %v1124 = vstv %s214
    %v1125 = vmul.f32 %v1122, %v1124
    %v1126 = vmul.f32 %v1123, %v1124
    %v1127 = vadd.f32 %v1120, %v1125
    %v1128 = vadd.f32 %v1121, %v1126
    %v1129 = vmax.f32 %v1077, 0.0
    %v1130 = vmax.f32 %v1078, 0.0
    %v1131 = vstv %s215
    %v1132 = vmul.f32 %v1129, %v1131
    %v1133 = vmul.f32 %v1130, %v1131
    %v1134 = vadd.f32 %v1127, %v1132
    %v1135 = vadd.f32 %v1128, %v1133
    %1136 = vst [vmem:[%s2] sm:$0xff] %v1134
    %1137 = vst [vmem:[%s2 + $0x8] sm:$0xff] %v1135
    // Predicated region
    $region14: #{classical_mlp_forward.1} parent=1 // pred_check
      _
    $region15: #{classical_mlp_forward.1} parent=1 // pred_check_branch
      %1139 = sbr.rel (0) target = $region17
    $region16: #{classical_mlp_forward.1} parent=1 // pred_region
      _
    $region17: #{classical_mlp_forward.1} parent=1 // pred_fallthru
      _
    // Predicated region
    $region18: #{classical_mlp_forward.1} parent=1 // pred_check
      _
    $region19: #{classical_mlp_forward.1} parent=1 // pred_check_branch
      %1141 = sbr.rel (0) target = $region21
    $region20: #{classical_mlp_forward.1} parent=1 // pred_region
      _
    $region21: #{classical_mlp_forward.1} parent=1 // pred_fallthru
      _
    %1142 = vsyncpa [#allocation3], 1

</llo_original>
